<compile_context>
chip_gen: v6e
topology: v6e:2x2x1
jax: 0.10.0
libtpu: 0.0.40
codegen_flags: <defaults>
</compile_context>

<pallas_src>
from functools import partial

import jax
import jax.numpy as jnp
from jax import lax
from jax.experimental import pallas as pl
from jax.experimental.pallas import tpu as pltpu


# ---------------------------------------------------------------------------
# Pallas kernel: the serial recurrence of one GRU layer.
# ---------------------------------------------------------------------------
def _gru_rec_kernel(gx_ref, whh_rz_ref, whh_n_ref, bhn_ref,
                    out_ref, hT_ref, h_scratch,
                    *, T_actual, TT, Hp, guard):
    """Recurrent part of one GRU layer.

    Grid = (batch_blocks, time_blocks); time is the inner ("arbitrary") axis.

    gx_ref    : (TT, BB, 3*Hp) compute_dtype  precomputed x@W_ih + folded biases
    whh_rz_ref: (Hp, 2*Hp)     compute_dtype  hidden->r/z gate weights
    whh_n_ref : (Hp, Hp)       compute_dtype  hidden->n gate weights
    bhn_ref   : (1, Hp)        f32            b_hn (stays inside r*(...))
    out_ref   : (TT, BB, Hp)   compute_dtype  per-step hidden outputs
    hT_ref    : (BB, Hp)       f32            final hidden state
    h_scratch : (BB, Hp)       f32            recurrent state across time blocks
    """
    tb = pl.program_id(1)
    BB = h_scratch.shape[0]

    @pl.when(tb == 0)
    def _():
        h_scratch[...] = jnp.zeros_like(h_scratch)

    # Constant-index weights: loaded once per grid step.
    whh_rz = whh_rz_ref[...]
    whh_n = whh_n_ref[...]
    # Hoist the b_hn broadcast out of the unrolled loop (JAX doesn't CSE it).
    bhn_b = jnp.broadcast_to(bhn_ref[...], (BB, Hp))

    t0 = tb * TT

    def step(i, h_prev):
        gx = gx_ref[i]                                    # (BB, 3Hp)
        h_lo = h_prev.astype(whh_rz.dtype)                # bf16 on the MXU
        # r/z dot first so the sigmoids (EUP) overlap the n-gate dot (MXU).
        gh_rz = jnp.dot(h_lo, whh_rz, preferred_element_type=jnp.float32)
        r = jax.nn.sigmoid(gx[:, 0:Hp].astype(jnp.float32) + gh_rz[:, 0:Hp])
        z = jax.nn.sigmoid(gx[:, Hp:2 * Hp].astype(jnp.float32) + gh_rz[:, Hp:])
        gh_n = jnp.dot(h_lo, whh_n, preferred_element_type=jnp.float32)
        n = jnp.tanh(gx[:, 2 * Hp:].astype(jnp.float32) + r * (gh_n + bhn_b))
        h_new = n + z * (h_prev - n)                      # == (1-z)n + z h
        if guard:                                         # padded time steps
            h_new = jnp.where(t0 + i < T_actual, h_new, h_prev)
        out_ref[i] = h_new.astype(out_ref.dtype)
        return h_new

    h_last = lax.fori_loop(0, TT, step, h_scratch[...], unroll=True)
    h_scratch[...] = h_last

    @pl.when(tb == pl.num_programs(1) - 1)
    def _():
        hT_ref[...] = h_last.astype(hT_ref.dtype)


def _gru_recurrence(gx_p, whh_rz_p, whh_n_p, bhn_p, *, T_actual, TT, BB):
    """Run the recurrent kernel over a (T_pad, Bp, 3Hp) projection."""
    T_pad, Bp, G = gx_p.shape
    Hp = whh_rz_p.shape[0]
    nt = T_pad // TT
    nb = Bp // BB
    guard = (T_pad != T_actual)

    itemsize = gx_p.dtype.itemsize
    gx_block = TT * BB * G * itemsize
    out_block = TT * BB * Hp * itemsize
    whh_bytes = (whh_rz_p.size + whh_n_p.size) * whh_rz_p.dtype.itemsize
    fixed = 2 * (whh_bytes + Hp * 4 + BB * Hp * 4) + BB * Hp * 4
    vmem_need = 2 * (gx_block + out_block) + fixed
    vmem_limit = int(min(max(int(vmem_need * 1.5) + (4 << 20), 32 << 20),
                         64 << 20))

    kernel = partial(_gru_rec_kernel, T_actual=T_actual, TT=TT, Hp=Hp,
                     guard=guard)

    out, h_last = pl.pallas_call(
        kernel,
        out_shape=(jax.ShapeDtypeStruct((T_pad, Bp, Hp), gx_p.dtype),
                   jax.ShapeDtypeStruct((Bp, Hp), jnp.float32)),
        grid_spec=pltpu.PrefetchScalarGridSpec(
            num_scalar_prefetch=0,
            grid=(nb, nt),
            in_specs=[
                pl.BlockSpec((TT, BB, G), lambda b, t: (t, b, 0)),     # gx
                pl.BlockSpec((Hp, 2 * Hp), lambda b, t: (0, 0)),       # W_hh rz
                pl.BlockSpec((Hp, Hp), lambda b, t: (0, 0)),           # W_hh n
                pl.BlockSpec((1, Hp), lambda b, t: (0, 0)),            # b_hn
            ],
            out_specs=[
                pl.BlockSpec((TT, BB, Hp), lambda b, t: (t, b, 0)),    # out
                pl.BlockSpec((BB, Hp), lambda b, t: (b, 0)),           # final h
            ],
            scratch_shapes=[pltpu.VMEM((BB, Hp), jnp.float32)],
        ),
        compiler_params=pltpu.CompilerParams(
            # time is a true recurrence -> arbitrary; batch blocks -> parallel
            dimension_semantics=("parallel", "arbitrary"),
            vmem_limit_bytes=vmem_limit),
    )(gx_p, whh_rz_p, whh_n_p, bhn_p)
    return out, h_last


# ---------------------------------------------------------------------------
# Padding / parameter preparation helpers (wrapper-side, plain XLA).
# ---------------------------------------------------------------------------
def _round_up(x, m):
    return (x + m - 1) // m * m


def _pad_axis(a, axis, new_size):
    pad = new_size - a.shape[axis]
    if pad == 0:
        return a
    widths = [(0, 0)] * a.ndim
    widths[axis] = (0, pad)
    return jnp.pad(a, widths)


def _pad_gate_cols(w, H, Hp):
    """(rows, 3H) with gates [r|z|n] -> (rows, 3Hp), each gate block padded
    independently so gate slices stay lane-tile aligned."""
    parts = [_pad_axis(w[:, g * H:(g + 1) * H], 1, Hp) for g in range(3)]
    return jnp.concatenate(parts, axis=1)


def _prepare_padded_params(params, Hp, compute_dtype):
    padded = []
    for layer, (wih_t, whh_t, bih, bhh) in enumerate(params):
        H = whh_t.shape[0]
        wih_p = _pad_gate_cols(wih_t, H, Hp)                    # (in_dim, 3Hp)
        if layer > 0:
            wih_p = _pad_axis(wih_p, 0, Hp)                     # (Hp, 3Hp)
        whh_p = _pad_axis(_pad_gate_cols(whh_t, H, Hp), 0, Hp)  # (Hp, 3Hp)
        # Fold b_ih (all gates) and b_hh (r, z gates) into the projection bias.
        b_proj = bih + jnp.concatenate(
            [bhh[:, :2 * H], jnp.zeros_like(bhh[:, 2 * H:])], axis=1)
        b_proj_p = _pad_gate_cols(b_proj, H, Hp)                # (1, 3Hp), f32
        bhn_p = _pad_axis(bhh[:, 2 * H:], 1, Hp)                # (1, Hp),  f32
        padded.append((wih_p.astype(compute_dtype),
                       b_proj_p,
                       whh_p[:, :2 * Hp].astype(compute_dtype),
                       whh_p[:, 2 * Hp:].astype(compute_dtype),
                       bhn_p))
    return padded


def _choose_batch_blocking(B, Hp, itemsize):
    """Pick (Bp, BB): sublane-aligned for the compute dtype, >=2 blocks when
    batch allows (both TensorCores on v7x), BB capped so per-step gate
    temporaries (~BB x 3Hp f32) stay register/VMEM friendly."""
    sub = 8 * (4 // itemsize)          # 8 for f32, 16 for bf16
    if B <= sub:
        return sub, sub
    Bp = _round_up(B, 2 * sub)
    BB = Bp // 2
    max_bb = max(sub, ((64 * 1024) // Hp) // sub * sub)
    while BB > max_bb and (BB // 2) % sub == 0:
        BB //= 2
    return Bp, BB


def _choose_time_block(T, BB, Hp, itemsize):
    """VMEM-budget-driven TT: double-buffered gx+out blocks <= ~24 MiB
    (fits v7x's 64 MiB scoped VMEM with headroom), capped at 128."""
    budget = 24 << 20
    per_step = 2 * (BB * 4 * Hp) * itemsize     # gx (3Hp) + out (Hp), x2 bufs
    t_cap = _round_up(T, 8)
    tt = 1
    while (tt * 2 <= 128 and (tt * 2) * per_step <= budget
           and tt * 2 <= t_cap):
        tt *= 2
    return tt


# ---------------------------------------------------------------------------
# Parameter init (torch.nn.GRU-compatible shapes, kept transposed for x @ W).
# ---------------------------------------------------------------------------
def init_encoder_params(key, input_size, hidden_size, n_layers):
    params = []
    bound = 1.0 / jnp.sqrt(jnp.float32(hidden_size))
    for layer in range(n_layers):
        in_dim = input_size if layer == 0 else hidden_size
        key, k1, k2, k3, k4 = jax.random.split(key, 5)
        wih_t = jax.random.uniform(k1, (in_dim, 3 * hidden_size),
                                   jnp.float32, -bound, bound)
        whh_t = jax.random.uniform(k2, (hidden_size, 3 * hidden_size),
                                   jnp.float32, -bound, bound)
        bih = jax.random.uniform(k3, (1, 3 * hidden_size),
                                 jnp.float32, -bound, bound)
        bhh = jax.random.uniform(k4, (1, 3 * hidden_size),
                                 jnp.float32, -bound, bound)
        params.append((wih_t, whh_t, bih, bhh))
    return params


# ---------------------------------------------------------------------------
# Encoder forward: x (B, T, input_size) -> (out (B,T,H), hidden (L,B,H))
# ---------------------------------------------------------------------------
@partial(jax.jit, static_argnames=("compute_dtype",))
def encoder_forward(x, params, compute_dtype=jnp.bfloat16):
    B, T, _ = x.shape
    H = params[0][1].shape[0]                     # hidden size from W_hh rows
    Hp = _round_up(H, 128)                        # lane-aligned hidden
    itemsize = jnp.dtype(compute_dtype).itemsize
    Bp, BB = _choose_batch_blocking(B, Hp, itemsize)
    TT = _choose_time_block(T, BB, Hp, itemsize)
    T_pad = _round_up(T, TT)

    padded = _prepare_padded_params(params, Hp, compute_dtype)

    x_t = jnp.transpose(x, (1, 0, 2))             # time-major (T, B, D)
    layer_in = _pad_axis(_pad_axis(x_t, 1, Bp), 0, T_pad)   # (T_pad, Bp, D)
    layer_in = layer_in.astype(compute_dtype)

    finals = []
    for (wih_p, bproj_p, whh_rz_p, whh_n_p, bhn_p) in padded:
        # Hoisted input projection: one big (T_pad*Bp, Din) @ (Din, 3Hp) matmul
        # done by XLA in compute_dtype with f32 accumulation; only the serial
        # h @ W_hh part goes into the Pallas kernel.  Stored bf16 to halve
        # HBM traffic of the fattest streamed tensor.
        gx = (jnp.einsum('tbd,dg->tbg', layer_in, wih_p,
                         preferred_element_type=jnp.float32)
              + bproj_p).astype(compute_dtype)
        layer_out, h_last = _gru_recurrence(gx, whh_rz_p, whh_n_p, bhn_p,
                                            T_actual=T, TT=TT, BB=BB)
        finals.append(h_last)
        layer_in = layer_out                      # (T_pad, Bp, Hp)

    out = jnp.transpose(layer_in, (1, 0, 2))[:B, :T, :H].astype(x.dtype)
    hidden = jnp.stack(finals, axis=0)[:, :B, :H].astype(x.dtype)
    return out, hidden


# ---------------------------------------------------------------------------
# Pure-JAX reference (same math as torch.nn.GRU) for the correctness check.
# ---------------------------------------------------------------------------
def _reference_forward(x, params):
    B, T, _ = x.shape
    layer_in = x
    finals = []
    for (wih_t, whh_t, bih, bhh) in params:
        H = whh_t.shape[0]
        h = jnp.zeros((B, H), jnp.float32)
        outs = []
        for t in range(T):
            xt = layer_in[:, t, :]
            gx = xt @ wih_t + bih
            gh = h @ whh_t + bhh
            r = jax.nn.sigmoid(gx[:, :H] + gh[:, :H])
            z = jax.nn.sigmoid(gx[:, H:2 * H] + gh[:, H:2 * H])
            n = jnp.tanh(gx[:, 2 * H:] + r * gh[:, 2 * H:])
            h = (1.0 - z) * n + z * h
            outs.append(h)
        layer_in = jnp.stack(outs, axis=1)
        finals.append(h)
    return layer_in, jnp.stack(finals, axis=0)


if __name__ == "__main__":
    B, T = 2, 8
    INPUT_SIZE, HIDDEN_SIZE, N_LAYERS = 16, 32, 2

    key = jax.random.PRNGKey(0)
    kx, kp = jax.random.split(key)
    x = jax.random.normal(kx, (B, T, INPUT_SIZE), jnp.float32)
    params = init_encoder_params(kp, INPUT_SIZE, HIDDEN_SIZE, N_LAYERS)

    ref_out, ref_hidden = _reference_forward(x, params)

    # Production path: bf16 streams / matmuls, f32 gate math & state.
    out, hidden = encoder_forward(x, params, compute_dtype=jnp.bfloat16)
    out = jax.block_until_ready(out)
    hidden = jax.block_until_ready(hidden)
    assert out.shape == (B, T, HIDDEN_SIZE)
    assert hidden.shape == (N_LAYERS, B, HIDDEN_SIZE)
    assert jnp.allclose(out, ref_out, atol=5e-2, rtol=5e-2)
    assert jnp.allclose(hidden, ref_hidden, atol=5e-2, rtol=5e-2)

    # Precise mode (f32 end-to-end) for a tight numerical check.
    out32, hidden32 = encoder_forward(x, params, compute_dtype=jnp.float32)
    out32 = jax.block_until_ready(out32)
    hidden32 = jax.block_until_ready(hidden32)
    assert jnp.allclose(out32, ref_out, atol=1e-4, rtol=1e-4)
    assert jnp.allclose(hidden32, ref_hidden, atol=1e-4, rtol=1e-4)

    print("KERNEL_OK")
</pallas_src>

<mosaic_0001>
module attributes {stable_mosaic.version = 11 : i64} {
  func.func @_gru_rec_kernel(%arg0: i32, %arg1: i32, %arg2: memref<8x16x384xbf16, #tpu.memory_space<vmem>>, %arg3: memref<128x256xbf16, #tpu.memory_space<vmem>>, %arg4: memref<128x128xbf16, #tpu.memory_space<vmem>>, %arg5: memref<1x128xf32, #tpu.memory_space<vmem>>, %arg6: memref<8x16x128xbf16, #tpu.memory_space<vmem>>, %arg7: memref<16x128xf32, #tpu.memory_space<vmem>>, %arg8: memref<16x128xf32, #tpu.memory_space<vmem>>) attributes {dimension_semantics = [#tpu.dimension_semantics<parallel>, #tpu.dimension_semantics<arbitrary>], iteration_bounds = array<i64: 1, 1>, scalar_prefetch = 0 : i64, scratch_operands = 1 : i64, tpu.core_type = #tpu.core_type<tc>, window_params = [{transform_indices = @transform_0, window_bounds = array<i64: 8, 16, 384>}, {pipeline_mode = #tpu.pipeline_mode<synchronous>, transform_indices = @transform_1, window_bounds = array<i64: 128, 256>}, {pipeline_mode = #tpu.pipeline_mode<synchronous>, transform_indices = @transform_2, window_bounds = array<i64: 128, 128>}, {pipeline_mode = #tpu.pipeline_mode<synchronous>, transform_indices = @transform_3, window_bounds = array<i64: 1, 128>}, {transform_indices = @transform_4, window_bounds = array<i64: 8, 16, 128>}, {transform_indices = @transform_5, window_bounds = array<i64: 16, 128>}]} {
    %c0_i32 = arith.constant 0 : i32
    %0 = arith.cmpi eq, %arg1, %c0_i32 : i32
    %1 = arith.extui %0 : i1 to i32
    %c0_i32_0 = arith.constant 0 : i32
    %2 = arith.cmpi ne, %1, %c0_i32_0 : i32
    scf.if %2 {
      %cst_76 = arith.constant 0.000000e+00 : f32
      %317 = vector.broadcast %cst_76 : f32 to vector<16x128xf32>
      %c0_77 = arith.constant 0 : index
      %c0_78 = arith.constant 0 : index
      %318 = vector.load %arg8[%c0_77, %c0_78] : memref<16x128xf32, #tpu.memory_space<vmem>>, vector<16x128xf32>
      tpu.vector_store %arg8[%c0_77, %c0_78], %317 {strides = array<i32>} : memref<16x128xf32, #tpu.memory_space<vmem>>, vector<16x128xf32>,
    } else {
    }
    %c0 = arith.constant 0 : index
    %c0_1 = arith.constant 0 : index
    %3 = vector.load %arg3[%c0, %c0_1] : memref<128x256xbf16, #tpu.memory_space<vmem>>, vector<128x256xbf16>
    %c0_2 = arith.constant 0 : index
    %c0_3 = arith.constant 0 : index
    %4 = vector.load %arg4[%c0_2, %c0_3] : memref<128x128xbf16, #tpu.memory_space<vmem>>, vector<128x128xbf16>
    %c0_4 = arith.constant 0 : index
    %c0_5 = arith.constant 0 : index
    %5 = vector.load %arg5[%c0_4, %c0_5] : memref<1x128xf32, #tpu.memory_space<vmem>>, vector<1x128xf32>
    %6 = vector.shape_cast %5 : vector<1x128xf32> to vector<1x128xf32>
    %7 = vector.broadcast %6 : vector<1x128xf32> to vector<16x128xf32>
    %c0_6 = arith.constant 0 : index
    %c0_7 = arith.constant 0 : index
    %8 = vector.load %arg8[%c0_6, %c0_7] : memref<16x128xf32, #tpu.memory_space<vmem>>, vector<16x128xf32>
    %c0_i32_8 = arith.constant 0 : i32
    %9 = arith.index_cast %c0_i32_8 : i32 to index
    %c0_9 = arith.constant 0 : index
    %c0_10 = arith.constant 0 : index
    %10 = vector.load %arg2[%9, %c0_9, %c0_10] : memref<8x16x384xbf16, #tpu.memory_space<vmem>>, vector<1x16x384xbf16>
    %11 = vector.shape_cast %10 : vector<1x16x384xbf16> to vector<16x384xbf16>
    %12 = arith.truncf %8 : vector<16x128xf32> to vector<16x128xbf16>
    %cst = arith.constant dense<0.000000e+00> : vector<16x256xf32>
    %13 = tpu.matmul %12, %3, %cst {dimension_numbers = #tpu.dot_dimension_numbers<[1], [0], [0], [1], [0, 0, 1, 1], [], []>} : vector<16x128xbf16>, vector<128x256xbf16>, vector<16x256xf32> -> vector<16x256xf32>
    %14 = vector.extract_strided_slice %11 {offsets = [0, 0], sizes = [16, 128], strides = [1, 1]} : vector<16x384xbf16> to vector<16x128xbf16>
    %15 = arith.extf %14 : vector<16x128xbf16> to vector<16x128xf32>
    %16 = vector.extract_strided_slice %13 {offsets = [0, 0], sizes = [16, 128], strides = [1, 1]} : vector<16x256xf32> to vector<16x128xf32>
    %17 = arith.addf %15, %16 : vector<16x128xf32>
    %18 = arith.negf %17 : vector<16x128xf32>
    %19 = math.exp %18 : vector<16x128xf32>
    %cst_11 = arith.constant 1.000000e+00 : f32
    %20 = vector.broadcast %cst_11 : f32 to vector<16x128xf32>
    %21 = arith.addf %20, %19 : vector<16x128xf32>
    %22 = arith.divf %20, %21 : vector<16x128xf32>
    %23 = vector.extract_strided_slice %11 {offsets = [0, 128], sizes = [16, 128], strides = [1, 1]} : vector<16x384xbf16> to vector<16x128xbf16>
    %24 = arith.extf %23 : vector<16x128xbf16> to vector<16x128xf32>
    %25 = vector.extract_strided_slice %13 {offsets = [0, 128], sizes = [16, 128], strides = [1, 1]} : vector<16x256xf32> to vector<16x128xf32>
    %26 = arith.addf %24, %25 : vector<16x128xf32>
    %27 = arith.negf %26 : vector<16x128xf32>
    %28 = math.exp %27 : vector<16x128xf32>
    %cst_12 = arith.constant 1.000000e+00 : f32
    %29 = vector.broadcast %cst_12 : f32 to vector<16x128xf32>
    %30 = arith.addf %29, %28 : vector<16x128xf32>
    %31 = arith.divf %29, %30 : vector<16x128xf32>
    %cst_13 = arith.constant dense<0.000000e+00> : vector<16x128xf32>
    %32 = tpu.matmul %12, %4, %cst_13 {dimension_numbers = #tpu.dot_dimension_numbers<[1], [0], [0], [1], [0, 0, 1, 1], [], []>} : vector<16x128xbf16>, vector<128x128xbf16>, vector<16x128xf32> -> vector<16x128xf32>
    %33 = vector.extract_strided_slice %11 {offsets = [0, 256], sizes = [16, 128], strides = [1, 1]} : vector<16x384xbf16> to vector<16x128xbf16>
    %34 = arith.extf %33 : vector<16x128xbf16> to vector<16x128xf32>
    %35 = arith.addf %32, %7 : vector<16x128xf32>
    %36 = arith.mulf %22, %35 : vector<16x128xf32>
    %37 = arith.addf %34, %36 : vector<16x128xf32>
    %38 = math.tanh %37 : vector<16x128xf32>
    %39 = arith.subf %8, %38 : vector<16x128xf32>
    %40 = arith.mulf %31, %39 : vector<16x128xf32>
    %41 = arith.addf %38, %40 : vector<16x128xf32>
    %42 = arith.truncf %41 : vector<16x128xf32> to vector<16x128xbf16>
    %43 = arith.index_cast %c0_i32_8 : i32 to index
    %c0_14 = arith.constant 0 : index
    %c0_15 = arith.constant 0 : index
    %44 = vector.load %arg6[%43, %c0_14, %c0_15] : memref<8x16x128xbf16, #tpu.memory_space<vmem>>, vector<1x16x128xbf16>
    %45 = vector.shape_cast %44 : vector<1x16x128xbf16> to vector<16x128xbf16>
    %46 = vector.shape_cast %42 : vector<16x128xbf16> to vector<1x16x128xbf16>
    tpu.vector_store %arg6[%43, %c0_14, %c0_15], %46 {strides = array<i32>} : memref<8x16x128xbf16, #tpu.memory_space<vmem>>, vector<1x16x128xbf16>,
    %c1_i32 = arith.constant 1 : i32
    %47 = arith.index_cast %c1_i32 : i32 to index
    %c0_16 = arith.constant 0 : index
    %c0_17 = arith.constant 0 : index
    %48 = vector.load %arg2[%47, %c0_16, %c0_17] : memref<8x16x384xbf16, #tpu.memory_space<vmem>>, vector<1x16x384xbf16>
    %49 = vector.shape_cast %48 : vector<1x16x384xbf16> to vector<16x384xbf16>
    %50 = arith.truncf %41 : vector<16x128xf32> to vector<16x128xbf16>
    %cst_18 = arith.constant dense<0.000000e+00> : vector<16x256xf32>
    %51 = tpu.matmul %50, %3, %cst_18 {dimension_numbers = #tpu.dot_dimension_numbers<[1], [0], [0], [1], [0, 0, 1, 1], [], []>} : vector<16x128xbf16>, vector<128x256xbf16>, vector<16x256xf32> -> vector<16x256xf32>
    %52 = vector.extract_strided_slice %49 {offsets = [0, 0], sizes = [16, 128], strides = [1, 1]} : vector<16x384xbf16> to vector<16x128xbf16>
    %53 = arith.extf %52 : vector<16x128xbf16> to vector<16x128xf32>
    %54 = vector.extract_strided_slice %51 {offsets = [0, 0], sizes = [16, 128], strides = [1, 1]} : vector<16x256xf32> to vector<16x128xf32>
    %55 = arith.addf %53, %54 : vector<16x128xf32>
    %56 = arith.negf %55 : vector<16x128xf32>
    %57 = math.exp %56 : vector<16x128xf32>
    %cst_19 = arith.constant 1.000000e+00 : f32
    %58 = vector.broadcast %cst_19 : f32 to vector<16x128xf32>
    %59 = arith.addf %58, %57 : vector<16x128xf32>
    %60 = arith.divf %58, %59 : vector<16x128xf32>
    %61 = vector.extract_strided_slice %49 {offsets = [0, 128], sizes = [16, 128], strides = [1, 1]} : vector<16x384xbf16> to vector<16x128xbf16>
    %62 = arith.extf %61 : vector<16x128xbf16> to vector<16x128xf32>
    %63 = vector.extract_strided_slice %51 {offsets = [0, 128], sizes = [16, 128], strides = [1, 1]} : vector<16x256xf32> to vector<16x128xf32>
    %64 = arith.addf %62, %63 : vector<16x128xf32>
    %65 = arith.negf %64 : vector<16x128xf32>
    %66 = math.exp %65 : vector<16x128xf32>
    %cst_20 = arith.constant 1.000000e+00 : f32
    %67 = vector.broadcast %cst_20 : f32 to vector<16x128xf32>
    %68 = arith.addf %67, %66 : vector<16x128xf32>
    %69 = arith.divf %67, %68 : vector<16x128xf32>
    %cst_21 = arith.constant dense<0.000000e+00> : vector<16x128xf32>
    %70 = tpu.matmul %50, %4, %cst_21 {dimension_numbers = #tpu.dot_dimension_numbers<[1], [0], [0], [1], [0, 0, 1, 1], [], []>} : vector<16x128xbf16>, vector<128x128xbf16>, vector<16x128xf32> -> vector<16x128xf32>
    %71 = vector.extract_strided_slice %49 {offsets = [0, 256], sizes = [16, 128], strides = [1, 1]} : vector<16x384xbf16> to vector<16x128xbf16>
    %72 = arith.extf %71 : vector<16x128xbf16> to vector<16x128xf32>
    %73 = arith.addf %70, %7 : vector<16x128xf32>
    %74 = arith.mulf %60, %73 : vector<16x128xf32>
    %75 = arith.addf %72, %74 : vector<16x128xf32>
    %76 = math.tanh %75 : vector<16x128xf32>
    %77 = arith.subf %41, %76 : vector<16x128xf32>
    %78 = arith.mulf %69, %77 : vector<16x128xf32>
    %79 = arith.addf %76, %78 : vector<16x128xf32>
    %80 = arith.truncf %79 : vector<16x128xf32> to vector<16x128xbf16>
    %81 = arith.index_cast %c1_i32 : i32 to index
    %c0_22 = arith.constant 0 : index
    %c0_23 = arith.constant 0 : index
    %82 = vector.load %arg6[%81, %c0_22, %c0_23] : memref<8x16x128xbf16, #tpu.memory_space<vmem>>, vector<1x16x128xbf16>
    %83 = vector.shape_cast %82 : vector<1x16x128xbf16> to vector<16x128xbf16>
    %84 = vector.shape_cast %80 : vector<16x128xbf16> to vector<1x16x128xbf16>
    tpu.vector_store %arg6[%81, %c0_22, %c0_23], %84 {strides = array<i32>} : memref<8x16x128xbf16, #tpu.memory_space<vmem>>, vector<1x16x128xbf16>,
    %c2_i32 = arith.constant 2 : i32
    %85 = arith.index_cast %c2_i32 : i32 to index
    %c0_24 = arith.constant 0 : index
    %c0_25 = arith.constant 0 : index
    %86 = vector.load %arg2[%85, %c0_24, %c0_25] : memref<8x16x384xbf16, #tpu.memory_space<vmem>>, vector<1x16x384xbf16>
    %87 = vector.shape_cast %86 : vector<1x16x384xbf16> to vector<16x384xbf16>
    %88 = arith.truncf %79 : vector<16x128xf32> to vector<16x128xbf16>
    %cst_26 = arith.constant dense<0.000000e+00> : vector<16x256xf32>
    %89 = tpu.matmul %88, %3, %cst_26 {dimension_numbers = #tpu.dot_dimension_numbers<[1], [0], [0], [1], [0, 0, 1, 1], [], []>} : vector<16x128xbf16>, vector<128x256xbf16>, vector<16x256xf32> -> vector<16x256xf32>
    %90 = vector.extract_strided_slice %87 {offsets = [0, 0], sizes = [16, 128], strides = [1, 1]} : vector<16x384xbf16> to vector<16x128xbf16>
    %91 = arith.extf %90 : vector<16x128xbf16> to vector<16x128xf32>
    %92 = vector.extract_strided_slice %89 {offsets = [0, 0], sizes = [16, 128], strides = [1, 1]} : vector<16x256xf32> to vector<16x128xf32>
    %93 = arith.addf %91, %92 : vector<16x128xf32>
    %94 = arith.negf %93 : vector<16x128xf32>
    %95 = math.exp %94 : vector<16x128xf32>
    %cst_27 = arith.constant 1.000000e+00 : f32
    %96 = vector.broadcast %cst_27 : f32 to vector<16x128xf32>
    %97 = arith.addf %96, %95 : vector<16x128xf32>
    %98 = arith.divf %96, %97 : vector<16x128xf32>
    %99 = vector.extract_strided_slice %87 {offsets = [0, 128], sizes = [16, 128], strides = [1, 1]} : vector<16x384xbf16> to vector<16x128xbf16>
    %100 = arith.extf %99 : vector<16x128xbf16> to vector<16x128xf32>
    %101 = vector.extract_strided_slice %89 {offsets = [0, 128], sizes = [16, 128], strides = [1, 1]} : vector<16x256xf32> to vector<16x128xf32>
    %102 = arith.addf %100, %101 : vector<16x128xf32>
    %103 = arith.negf %102 : vector<16x128xf32>
    %104 = math.exp %103 : vector<16x128xf32>
    %cst_28 = arith.constant 1.000000e+00 : f32
    %105 = vector.broadcast %cst_28 : f32 to vector<16x128xf32>
    %106 = arith.addf %105, %104 : vector<16x128xf32>
    %107 = arith.divf %105, %106 : vector<16x128xf32>
    %cst_29 = arith.constant dense<0.000000e+00> : vector<16x128xf32>
    %108 = tpu.matmul %88, %4, %cst_29 {dimension_numbers = #tpu.dot_dimension_numbers<[1], [0], [0], [1], [0, 0, 1, 1], [], []>} : vector<16x128xbf16>, vector<128x128xbf16>, vector<16x128xf32> -> vector<16x128xf32>
    %109 = vector.extract_strided_slice %87 {offsets = [0, 256], sizes = [16, 128], strides = [1, 1]} : vector<16x384xbf16> to vector<16x128xbf16>
    %110 = arith.extf %109 : vector<16x128xbf16> to vector<16x128xf32>
    %111 = arith.addf %108, %7 : vector<16x128xf32>
    %112 = arith.mulf %98, %111 : vector<16x128xf32>
    %113 = arith.addf %110, %112 : vector<16x128xf32>
    %114 = math.tanh %113 : vector<16x128xf32>
    %115 = arith.subf %79, %114 : vector<16x128xf32>
    %116 = arith.mulf %107, %115 : vector<16x128xf32>
    %117 = arith.addf %114, %116 : vector<16x128xf32>
    %118 = arith.truncf %117 : vector<16x128xf32> to vector<16x128xbf16>
    %119 = arith.index_cast %c2_i32 : i32 to index
    %c0_30 = arith.constant 0 : index
    %c0_31 = arith.constant 0 : index
    %120 = vector.load %arg6[%119, %c0_30, %c0_31] : memref<8x16x128xbf16, #tpu.memory_space<vmem>>, vector<1x16x128xbf16>
    %121 = vector.shape_cast %120 : vector<1x16x128xbf16> to vector<16x128xbf16>
    %122 = vector.shape_cast %118 : vector<16x128xbf16> to vector<1x16x128xbf16>
    tpu.vector_store %arg6[%119, %c0_30, %c0_31], %122 {strides = array<i32>} : memref<8x16x128xbf16, #tpu.memory_space<vmem>>, vector<1x16x128xbf16>,
    %c3_i32 = arith.constant 3 : i32
    %123 = arith.index_cast %c3_i32 : i32 to index
    %c0_32 = arith.constant 0 : index
    %c0_33 = arith.constant 0 : index
    %124 = vector.load %arg2[%123, %c0_32, %c0_33] : memref<8x16x384xbf16, #tpu.memory_space<vmem>>, vector<1x16x384xbf16>
    %125 = vector.shape_cast %124 : vector<1x16x384xbf16> to vector<16x384xbf16>
    %126 = arith.truncf %117 : vector<16x128xf32> to vector<16x128xbf16>
    %cst_34 = arith.constant dense<0.000000e+00> : vector<16x256xf32>
    %127 = tpu.matmul %126, %3, %cst_34 {dimension_numbers = #tpu.dot_dimension_numbers<[1], [0], [0], [1], [0, 0, 1, 1], [], []>} : vector<16x128xbf16>, vector<128x256xbf16>, vector<16x256xf32> -> vector<16x256xf32>
    %128 = vector.extract_strided_slice %125 {offsets = [0, 0], sizes = [16, 128], strides = [1, 1]} : vector<16x384xbf16> to vector<16x128xbf16>
    %129 = arith.extf %128 : vector<16x128xbf16> to vector<16x128xf32>
    %130 = vector.extract_strided_slice %127 {offsets = [0, 0], sizes = [16, 128], strides = [1, 1]} : vector<16x256xf32> to vector<16x128xf32>
    %131 = arith.addf %129, %130 : vector<16x128xf32>
    %132 = arith.negf %131 : vector<16x128xf32>
    %133 = math.exp %132 : vector<16x128xf32>
    %cst_35 = arith.constant 1.000000e+00 : f32
    %134 = vector.broadcast %cst_35 : f32 to vector<16x128xf32>
    %135 = arith.addf %134, %133 : vector<16x128xf32>
    %136 = arith.divf %134, %135 : vector<16x128xf32>
    %137 = vector.extract_strided_slice %125 {offsets = [0, 128], sizes = [16, 128], strides = [1, 1]} : vector<16x384xbf16> to vector<16x128xbf16>
    %138 = arith.extf %137 : vector<16x128xbf16> to vector<16x128xf32>
    %139 = vector.extract_strided_slice %127 {offsets = [0, 128], sizes = [16, 128], strides = [1, 1]} : vector<16x256xf32> to vector<16x128xf32>
    %140 = arith.addf %138, %139 : vector<16x128xf32>
    %141 = arith.negf %140 : vector<16x128xf32>
    %142 = math.exp %141 : vector<16x128xf32>
    %cst_36 = arith.constant 1.000000e+00 : f32
    %143 = vector.broadcast %cst_36 : f32 to vector<16x128xf32>
    %144 = arith.addf %143, %142 : vector<16x128xf32>
    %145 = arith.divf %143, %144 : vector<16x128xf32>
    %cst_37 = arith.constant dense<0.000000e+00> : vector<16x128xf32>
    %146 = tpu.matmul %126, %4, %cst_37 {dimension_numbers = #tpu.dot_dimension_numbers<[1], [0], [0], [1], [0, 0, 1, 1], [], []>} : vector<16x128xbf16>, vector<128x128xbf16>, vector<16x128xf32> -> vector<16x128xf32>
    %147 = vector.extract_strided_slice %125 {offsets = [0, 256], sizes = [16, 128], strides = [1, 1]} : vector<16x384xbf16> to vector<16x128xbf16>
    %148 = arith.extf %147 : vector<16x128xbf16> to vector<16x128xf32>
    %149 = arith.addf %146, %7 : vector<16x128xf32>
    %150 = arith.mulf %136, %149 : vector<16x128xf32>
    %151 = arith.addf %148, %150 : vector<16x128xf32>
    %152 = math.tanh %151 : vector<16x128xf32>
    %153 = arith.subf %117, %152 : vector<16x128xf32>
    %154 = arith.mulf %145, %153 : vector<16x128xf32>
    %155 = arith.addf %152, %154 : vector<16x128xf32>
    %156 = arith.truncf %155 : vector<16x128xf32> to vector<16x128xbf16>
    %157 = arith.index_cast %c3_i32 : i32 to index
    %c0_38 = arith.constant 0 : index
    %c0_39 = arith.constant 0 : index
    %158 = vector.load %arg6[%157, %c0_38, %c0_39] : memref<8x16x128xbf16, #tpu.memory_space<vmem>>, vector<1x16x128xbf16>
    %159 = vector.shape_cast %158 : vector<1x16x128xbf16> to vector<16x128xbf16>
    %160 = vector.shape_cast %156 : vector<16x128xbf16> to vector<1x16x128xbf16>
    tpu.vector_store %arg6[%157, %c0_38, %c0_39], %160 {strides = array<i32>} : memref<8x16x128xbf16, #tpu.memory_space<vmem>>, vector<1x16x128xbf16>,
    %c4_i32 = arith.constant 4 : i32
    %161 = arith.index_cast %c4_i32 : i32 to index
    %c0_40 = arith.constant 0 : index
    %c0_41 = arith.constant 0 : index
    %162 = vector.load %arg2[%161, %c0_40, %c0_41] : memref<8x16x384xbf16, #tpu.memory_space<vmem>>, vector<1x16x384xbf16>
    %163 = vector.shape_cast %162 : vector<1x16x384xbf16> to vector<16x384xbf16>
    %164 = arith.truncf %155 : vector<16x128xf32> to vector<16x128xbf16>
    %cst_42 = arith.constant dense<0.000000e+00> : vector<16x256xf32>
    %165 = tpu.matmul %164, %3, %cst_42 {dimension_numbers = #tpu.dot_dimension_numbers<[1], [0], [0], [1], [0, 0, 1, 1], [], []>} : vector<16x128xbf16>, vector<128x256xbf16>, vector<16x256xf32> -> vector<16x256xf32>
    %166 = vector.extract_strided_slice %163 {offsets = [0, 0], sizes = [16, 128], strides = [1, 1]} : vector<16x384xbf16> to vector<16x128xbf16>
    %167 = arith.extf %166 : vector<16x128xbf16> to vector<16x128xf32>
    %168 = vector.extract_strided_slice %165 {offsets = [0, 0], sizes = [16, 128], strides = [1, 1]} : vector<16x256xf32> to vector<16x128xf32>
    %169 = arith.addf %167, %168 : vector<16x128xf32>
    %170 = arith.negf %169 : vector<16x128xf32>
    %171 = math.exp %170 : vector<16x128xf32>
    %cst_43 = arith.constant 1.000000e+00 : f32
    %172 = vector.broadcast %cst_43 : f32 to vector<16x128xf32>
    %173 = arith.addf %172, %171 : vector<16x128xf32>
    %174 = arith.divf %172, %173 : vector<16x128xf32>
    %175 = vector.extract_strided_slice %163 {offsets = [0, 128], sizes = [16, 128], strides = [1, 1]} : vector<16x384xbf16> to vector<16x128xbf16>
    %176 = arith.extf %175 : vector<16x128xbf16> to vector<16x128xf32>
    %177 = vector.extract_strided_slice %165 {offsets = [0, 128], sizes = [16, 128], strides = [1, 1]} : vector<16x256xf32> to vector<16x128xf32>
    %178 = arith.addf %176, %177 : vector<16x128xf32>
    %179 = arith.negf %178 : vector<16x128xf32>
    %180 = math.exp %179 : vector<16x128xf32>
    %cst_44 = arith.constant 1.000000e+00 : f32
    %181 = vector.broadcast %cst_44 : f32 to vector<16x128xf32>
    %182 = arith.addf %181, %180 : vector<16x128xf32>
    %183 = arith.divf %181, %182 : vector<16x128xf32>
    %cst_45 = arith.constant dense<0.000000e+00> : vector<16x128xf32>
    %184 = tpu.matmul %164, %4, %cst_45 {dimension_numbers = #tpu.dot_dimension_numbers<[1], [0], [0], [1], [0, 0, 1, 1], [], []>} : vector<16x128xbf16>, vector<128x128xbf16>, vector<16x128xf32> -> vector<16x128xf32>
    %185 = vector.extract_strided_slice %163 {offsets = [0, 256], sizes = [16, 128], strides = [1, 1]} : vector<16x384xbf16> to vector<16x128xbf16>
    %186 = arith.extf %185 : vector<16x128xbf16> to vector<16x128xf32>
    %187 = arith.addf %184, %7 : vector<16x128xf32>
    %188 = arith.mulf %174, %187 : vector<16x128xf32>
    %189 = arith.addf %186, %188 : vector<16x128xf32>
    %190 = math.tanh %189 : vector<16x128xf32>
    %191 = arith.subf %155, %190 : vector<16x128xf32>
    %192 = arith.mulf %183, %191 : vector<16x128xf32>
    %193 = arith.addf %190, %192 : vector<16x128xf32>
    %194 = arith.truncf %193 : vector<16x128xf32> to vector<16x128xbf16>
    %195 = arith.index_cast %c4_i32 : i32 to index
    %c0_46 = arith.constant 0 : index
    %c0_47 = arith.constant 0 : index
    %196 = vector.load %arg6[%195, %c0_46, %c0_47] : memref<8x16x128xbf16, #tpu.memory_space<vmem>>, vector<1x16x128xbf16>
    %197 = vector.shape_cast %196 : vector<1x16x128xbf16> to vector<16x128xbf16>
    %198 = vector.shape_cast %194 : vector<16x128xbf16> to vector<1x16x128xbf16>
    tpu.vector_store %arg6[%195, %c0_46, %c0_47], %198 {strides = array<i32>} : memref<8x16x128xbf16, #tpu.memory_space<vmem>>, vector<1x16x128xbf16>,
    %c5_i32 = arith.constant 5 : i32
    %199 = arith.index_cast %c5_i32 : i32 to index
    %c0_48 = arith.constant 0 : index
    %c0_49 = arith.constant 0 : index
    %200 = vector.load %arg2[%199, %c0_48, %c0_49] : memref<8x16x384xbf16, #tpu.memory_space<vmem>>, vector<1x16x384xbf16>
    %201 = vector.shape_cast %200 : vector<1x16x384xbf16> to vector<16x384xbf16>
    %202 = arith.truncf %193 : vector<16x128xf32> to vector<16x128xbf16>
    %cst_50 = arith.constant dense<0.000000e+00> : vector<16x256xf32>
    %203 = tpu.matmul %202, %3, %cst_50 {dimension_numbers = #tpu.dot_dimension_numbers<[1], [0], [0], [1], [0, 0, 1, 1], [], []>} : vector<16x128xbf16>, vector<128x256xbf16>, vector<16x256xf32> -> vector<16x256xf32>
    %204 = vector.extract_strided_slice %201 {offsets = [0, 0], sizes = [16, 128], strides = [1, 1]} : vector<16x384xbf16> to vector<16x128xbf16>
    %205 = arith.extf %204 : vector<16x128xbf16> to vector<16x128xf32>
    %206 = vector.extract_strided_slice %203 {offsets = [0, 0], sizes = [16, 128], strides = [1, 1]} : vector<16x256xf32> to vector<16x128xf32>
    %207 = arith.addf %205, %206 : vector<16x128xf32>
    %208 = arith.negf %207 : vector<16x128xf32>
    %209 = math.exp %208 : vector<16x128xf32>
    %cst_51 = arith.constant 1.000000e+00 : f32
    %210 = vector.broadcast %cst_51 : f32 to vector<16x128xf32>
    %211 = arith.addf %210, %209 : vector<16x128xf32>
    %212 = arith.divf %210, %211 : vector<16x128xf32>
    %213 = vector.extract_strided_slice %201 {offsets = [0, 128], sizes = [16, 128], strides = [1, 1]} : vector<16x384xbf16> to vector<16x128xbf16>
    %214 = arith.extf %213 : vector<16x128xbf16> to vector<16x128xf32>
    %215 = vector.extract_strided_slice %203 {offsets = [0, 128], sizes = [16, 128], strides = [1, 1]} : vector<16x256xf32> to vector<16x128xf32>
    %216 = arith.addf %214, %215 : vector<16x128xf32>
    %217 = arith.negf %216 : vector<16x128xf32>
    %218 = math.exp %217 : vector<16x128xf32>
    %cst_52 = arith.constant 1.000000e+00 : f32
    %219 = vector.broadcast %cst_52 : f32 to vector<16x128xf32>
    %220 = arith.addf %219, %218 : vector<16x128xf32>
    %221 = arith.divf %219, %220 : vector<16x128xf32>
    %cst_53 = arith.constant dense<0.000000e+00> : vector<16x128xf32>
    %222 = tpu.matmul %202, %4, %cst_53 {dimension_numbers = #tpu.dot_dimension_numbers<[1], [0], [0], [1], [0, 0, 1, 1], [], []>} : vector<16x128xbf16>, vector<128x128xbf16>, vector<16x128xf32> -> vector<16x128xf32>
    %223 = vector.extract_strided_slice %201 {offsets = [0, 256], sizes = [16, 128], strides = [1, 1]} : vector<16x384xbf16> to vector<16x128xbf16>
    %224 = arith.extf %223 : vector<16x128xbf16> to vector<16x128xf32>
    %225 = arith.addf %222, %7 : vector<16x128xf32>
    %226 = arith.mulf %212, %225 : vector<16x128xf32>
    %227 = arith.addf %224, %226 : vector<16x128xf32>
    %228 = math.tanh %227 : vector<16x128xf32>
    %229 = arith.subf %193, %228 : vector<16x128xf32>
    %230 = arith.mulf %221, %229 : vector<16x128xf32>
    %231 = arith.addf %228, %230 : vector<16x128xf32>
    %232 = arith.truncf %231 : vector<16x128xf32> to vector<16x128xbf16>
    %233 = arith.index_cast %c5_i32 : i32 to index
    %c0_54 = arith.constant 0 : index
    %c0_55 = arith.constant 0 : index
    %234 = vector.load %arg6[%233, %c0_54, %c0_55] : memref<8x16x128xbf16, #tpu.memory_space<vmem>>, vector<1x16x128xbf16>
    %235 = vector.shape_cast %234 : vector<1x16x128xbf16> to vector<16x128xbf16>
    %236 = vector.shape_cast %232 : vector<16x128xbf16> to vector<1x16x128xbf16>
    tpu.vector_store %arg6[%233, %c0_54, %c0_55], %236 {strides = array<i32>} : memref<8x16x128xbf16, #tpu.memory_space<vmem>>, vector<1x16x128xbf16>,
    %c6_i32 = arith.constant 6 : i32
    %237 = arith.index_cast %c6_i32 : i32 to index
    %c0_56 = arith.constant 0 : index
    %c0_57 = arith.constant 0 : index
    %238 = vector.load %arg2[%237, %c0_56, %c0_57] : memref<8x16x384xbf16, #tpu.memory_space<vmem>>, vector<1x16x384xbf16>
    %239 = vector.shape_cast %238 : vector<1x16x384xbf16> to vector<16x384xbf16>
    %240 = arith.truncf %231 : vector<16x128xf32> to vector<16x128xbf16>
    %cst_58 = arith.constant dense<0.000000e+00> : vector<16x256xf32>
    %241 = tpu.matmul %240, %3, %cst_58 {dimension_numbers = #tpu.dot_dimension_numbers<[1], [0], [0], [1], [0, 0, 1, 1], [], []>} : vector<16x128xbf16>, vector<128x256xbf16>, vector<16x256xf32> -> vector<16x256xf32>
    %242 = vector.extract_strided_slice %239 {offsets = [0, 0], sizes = [16, 128], strides = [1, 1]} : vector<16x384xbf16> to vector<16x128xbf16>
    %243 = arith.extf %242 : vector<16x128xbf16> to vector<16x128xf32>
    %244 = vector.extract_strided_slice %241 {offsets = [0, 0], sizes = [16, 128], strides = [1, 1]} : vector<16x256xf32> to vector<16x128xf32>
    %245 = arith.addf %243, %244 : vector<16x128xf32>
    %246 = arith.negf %245 : vector<16x128xf32>
    %247 = math.exp %246 : vector<16x128xf32>
    %cst_59 = arith.constant 1.000000e+00 : f32
    %248 = vector.broadcast %cst_59 : f32 to vector<16x128xf32>
    %249 = arith.addf %248, %247 : vector<16x128xf32>
    %250 = arith.divf %248, %249 : vector<16x128xf32>
    %251 = vector.extract_strided_slice %239 {offsets = [0, 128], sizes = [16, 128], strides = [1, 1]} : vector<16x384xbf16> to vector<16x128xbf16>
    %252 = arith.extf %251 : vector<16x128xbf16> to vector<16x128xf32>
    %253 = vector.extract_strided_slice %241 {offsets = [0, 128], sizes = [16, 128], strides = [1, 1]} : vector<16x256xf32> to vector<16x128xf32>
    %254 = arith.addf %252, %253 : vector<16x128xf32>
    %255 = arith.negf %254 : vector<16x128xf32>
    %256 = math.exp %255 : vector<16x128xf32>
    %cst_60 = arith.constant 1.000000e+00 : f32
    %257 = vector.broadcast %cst_60 : f32 to vector<16x128xf32>
    %258 = arith.addf %257, %256 : vector<16x128xf32>
    %259 = arith.divf %257, %258 : vector<16x128xf32>
    %cst_61 = arith.constant dense<0.000000e+00> : vector<16x128xf32>
    %260 = tpu.matmul %240, %4, %cst_61 {dimension_numbers = #tpu.dot_dimension_numbers<[1], [0], [0], [1], [0, 0, 1, 1], [], []>} : vector<16x128xbf16>, vector<128x128xbf16>, vector<16x128xf32> -> vector<16x128xf32>
    %261 = vector.extract_strided_slice %239 {offsets = [0, 256], sizes = [16, 128], strides = [1, 1]} : vector<16x384xbf16> to vector<16x128xbf16>
    %262 = arith.extf %261 : vector<16x128xbf16> to vector<16x128xf32>
    %263 = arith.addf %260, %7 : vector<16x128xf32>
    %264 = arith.mulf %250, %263 : vector<16x128xf32>
    %265 = arith.addf %262, %264 : vector<16x128xf32>
    %266 = math.tanh %265 : vector<16x128xf32>
    %267 = arith.subf %231, %266 : vector<16x128xf32>
    %268 = arith.mulf %259, %267 : vector<16x128xf32>
    %269 = arith.addf %266, %268 : vector<16x128xf32>
    %270 = arith.truncf %269 : vector<16x128xf32> to vector<16x128xbf16>
    %271 = arith.index_cast %c6_i32 : i32 to index
    %c0_62 = arith.constant 0 : index
    %c0_63 = arith.constant 0 : index
    %272 = vector.load %arg6[%271, %c0_62, %c0_63] : memref<8x16x128xbf16, #tpu.memory_space<vmem>>, vector<1x16x128xbf16>
    %273 = vector.shape_cast %272 : vector<1x16x128xbf16> to vector<16x128xbf16>
    %274 = vector.shape_cast %270 : vector<16x128xbf16> to vector<1x16x128xbf16>
    tpu.vector_store %arg6[%271, %c0_62, %c0_63], %274 {strides = array<i32>} : memref<8x16x128xbf16, #tpu.memory_space<vmem>>, vector<1x16x128xbf16>,
    %c7_i32 = arith.constant 7 : i32
    %275 = arith.index_cast %c7_i32 : i32 to index
    %c0_64 = arith.constant 0 : index
    %c0_65 = arith.constant 0 : index
    %276 = vector.load %arg2[%275, %c0_64, %c0_65] : memref<8x16x384xbf16, #tpu.memory_space<vmem>>, vector<1x16x384xbf16>
    %277 = vector.shape_cast %276 : vector<1x16x384xbf16> to vector<16x384xbf16>
    %278 = arith.truncf %269 : vector<16x128xf32> to vector<16x128xbf16>
    %cst_66 = arith.constant dense<0.000000e+00> : vector<16x256xf32>
    %279 = tpu.matmul %278, %3, %cst_66 {dimension_numbers = #tpu.dot_dimension_numbers<[1], [0], [0], [1], [0, 0, 1, 1], [], []>} : vector<16x128xbf16>, vector<128x256xbf16>, vector<16x256xf32> -> vector<16x256xf32>
    %280 = vector.extract_strided_slice %277 {offsets = [0, 0], sizes = [16, 128], strides = [1, 1]} : vector<16x384xbf16> to vector<16x128xbf16>
    %281 = arith.extf %280 : vector<16x128xbf16> to vector<16x128xf32>
    %282 = vector.extract_strided_slice %279 {offsets = [0, 0], sizes = [16, 128], strides = [1, 1]} : vector<16x256xf32> to vector<16x128xf32>
    %283 = arith.addf %281, %282 : vector<16x128xf32>
    %284 = arith.negf %283 : vector<16x128xf32>
    %285 = math.exp %284 : vector<16x128xf32>
    %cst_67 = arith.constant 1.000000e+00 : f32
    %286 = vector.broadcast %cst_67 : f32 to vector<16x128xf32>
    %287 = arith.addf %286, %285 : vector<16x128xf32>
    %288 = arith.divf %286, %287 : vector<16x128xf32>
    %289 = vector.extract_strided_slice %277 {offsets = [0, 128], sizes = [16, 128], strides = [1, 1]} : vector<16x384xbf16> to vector<16x128xbf16>
    %290 = arith.extf %289 : vector<16x128xbf16> to vector<16x128xf32>
    %291 = vector.extract_strided_slice %279 {offsets = [0, 128], sizes = [16, 128], strides = [1, 1]} : vector<16x256xf32> to vector<16x128xf32>
    %292 = arith.addf %290, %291 : vector<16x128xf32>
    %293 = arith.negf %292 : vector<16x128xf32>
    %294 = math.exp %293 : vector<16x128xf32>
    %cst_68 = arith.constant 1.000000e+00 : f32
    %295 = vector.broadcast %cst_68 : f32 to vector<16x128xf32>
    %296 = arith.addf %295, %294 : vector<16x128xf32>
    %297 = arith.divf %295, %296 : vector<16x128xf32>
    %cst_69 = arith.constant dense<0.000000e+00> : vector<16x128xf32>
    %298 = tpu.matmul %278, %4, %cst_69 {dimension_numbers = #tpu.dot_dimension_numbers<[1], [0], [0], [1], [0, 0, 1, 1], [], []>} : vector<16x128xbf16>, vector<128x128xbf16>, vector<16x128xf32> -> vector<16x128xf32>
    %299 = vector.extract_strided_slice %277 {offsets = [0, 256], sizes = [16, 128], strides = [1, 1]} : vector<16x384xbf16> to vector<16x128xbf16>
    %300 = arith.extf %299 : vector<16x128xbf16> to vector<16x128xf32>
    %301 = arith.addf %298, %7 : vector<16x128xf32>
    %302 = arith.mulf %288, %301 : vector<16x128xf32>
    %303 = arith.addf %300, %302 : vector<16x128xf32>
    %304 = math.tanh %303 : vector<16x128xf32>
    %305 = arith.subf %269, %304 : vector<16x128xf32>
    %306 = arith.mulf %297, %305 : vector<16x128xf32>
    %307 = arith.addf %304, %306 : vector<16x128xf32>
    %308 = arith.truncf %307 : vector<16x128xf32> to vector<16x128xbf16>
    %309 = arith.index_cast %c7_i32 : i32 to index
    %c0_70 = arith.constant 0 : index
    %c0_71 = arith.constant 0 : index
    %310 = vector.load %arg6[%309, %c0_70, %c0_71] : memref<8x16x128xbf16, #tpu.memory_space<vmem>>, vector<1x16x128xbf16>
    %311 = vector.shape_cast %310 : vector<1x16x128xbf16> to vector<16x128xbf16>
    %312 = vector.shape_cast %308 : vector<16x128xbf16> to vector<1x16x128xbf16>
    tpu.vector_store %arg6[%309, %c0_70, %c0_71], %312 {strides = array<i32>} : memref<8x16x128xbf16, #tpu.memory_space<vmem>>, vector<1x16x128xbf16>,
    %c8_i32 = arith.constant 8 : i32
    %c0_72 = arith.constant 0 : index
    %c0_73 = arith.constant 0 : index
    %313 = vector.load %arg8[%c0_72, %c0_73] : memref<16x128xf32, #tpu.memory_space<vmem>>, vector<16x128xf32>
    tpu.vector_store %arg8[%c0_72, %c0_73], %307 {strides = array<i32>} : memref<16x128xf32, #tpu.memory_space<vmem>>, vector<16x128xf32>,
    %c0_i32_74 = arith.constant 0 : i32
    %314 = arith.cmpi eq, %arg1, %c0_i32_74 : i32
    %315 = arith.extui %314 : i1 to i32
    %c0_i32_75 = arith.constant 0 : i32
    %316 = arith.cmpi ne, %315, %c0_i32_75 : i32
    scf.if %316 {
      %c0_76 = arith.constant 0 : index
      %c0_77 = arith.constant 0 : index
      %317 = vector.load %arg7[%c0_76, %c0_77] : memref<16x128xf32, #tpu.memory_space<vmem>>, vector<16x128xf32>
      tpu.vector_store %arg7[%c0_76, %c0_77], %307 {strides = array<i32>} : memref<16x128xf32, #tpu.memory_space<vmem>>, vector<16x128xf32>,
    } else {
    }
    return
  }
  func.func @transform_0(%arg0: i32, %arg1: i32) -> (i32, i32, i32) {
    %c0_i32 = arith.constant 0 : i32
    %c0_i32_0 = arith.constant 0 : i32
    return %arg1, %arg0, %c0_i32 : i32, i32, i32
  }
  func.func @transform_1(%arg0: i32, %arg1: i32) -> (i32, i32) {
    %c0_i32 = arith.constant 0 : i32
    %c0_i32_0 = arith.constant 0 : i32
    %c0_i32_1 = arith.constant 0 : i32
    return %c0_i32, %c0_i32_0 : i32, i32
  }
  func.func @transform_2(%arg0: i32, %arg1: i32) -> (i32, i32) {
    %c0_i32 = arith.constant 0 : i32
    %c0_i32_0 = arith.constant 0 : i32
    %c0_i32_1 = arith.constant 0 : i32
    return %c0_i32, %c0_i32_0 : i32, i32
  }
  func.func @transform_3(%arg0: i32, %arg1: i32) -> (i32, i32) {
    %c0_i32 = arith.constant 0 : i32
    %c0_i32_0 = arith.constant 0 : i32
    %c0_i32_1 = arith.constant 0 : i32
    return %c0_i32, %c0_i32_0 : i32, i32
  }
  func.func @transform_4(%arg0: i32, %arg1: i32) -> (i32, i32, i32) {
    %c0_i32 = arith.constant 0 : i32
    %c0_i32_0 = arith.constant 0 : i32
    return %arg1, %arg0, %c0_i32 : i32, i32, i32
  }
  func.func @transform_5(%arg0: i32, %arg1: i32) -> (i32, i32) {
    %c0_i32 = arith.constant 0 : i32
    %c0_i32_0 = arith.constant 0 : i32
    return %arg0, %c0_i32 : i32, i32
  }
}

</mosaic_0001>

<llo_original>
// kernel: encoder_forward.2
$region0: #{encoder_forward.2}
  #allocation0 [shape = 'u32[]', space=smem, size = 0x4, offset = 0x4, fixed_abs, tag = 'smem constant byte address 0x4 - core index']
  #allocation1 [shape = 'u32[144,128]{1,0:T(1,128)}', space=vmem, size = 0x12000, scoped, tag = 'internal scratch']
  #allocation2 [shape = 'f32[16,128]{1,0:T(8,128)}', space=vmem, size = 0x2000, scoped, tag = 'scratch operand']
  %s0 = inlined_call_operand.vmem [shape: bf16[8,16,384], index: 0, kind: input, shape index: {}]
  %s1 = inlined_call_operand.vmem [shape: bf16[128,256], index: 1, kind: input, shape index: {}]
  %s2 = inlined_call_operand.vmem [shape: bf16[128,128], index: 2, kind: input, shape index: {}]
  %s3 = inlined_call_operand.vmem [shape: f32[1,128], index: 3, kind: input, shape index: {}]
  %s4 = inlined_call_operand.vmem [shape: bf16[8,16,128], index: 4, kind: output, shape index: {0}]
  %s5 = inlined_call_operand.vmem [shape: f32[16,128], index: 5, kind: output, shape index: {1}]
  %6 = xla_tuple %s4, %s5
  %s7 = sld [smem:[#allocation0]]
  $region42: #{encoder_forward.2} parent=0
    _
  %s9 = ssub.s32 1, %s7
  %s10 = scalar_select 0, %s9, %s7
  // Predicated region
  $region2: #{encoder_forward.2} parent=0 // pred_check
    _
  $region3: #{encoder_forward.2} parent=0 // pred_check_branch
    %12 = sbr.rel (0) target = $region5
  $region4: #{encoder_forward.2} parent=0 // pred_region
    _
  $region5: #{encoder_forward.2} parent=0 // pred_fallthru
    _
  // Predicated region
  $region6: #{encoder_forward.2} parent=0 // pred_check
    _
  $region7: #{encoder_forward.2} parent=0 // pred_check_branch
    %14 = sbr.rel (0) target = $region9
  $region8: #{encoder_forward.2} parent=0 // pred_region
    _
  $region9: #{encoder_forward.2} parent=0 // pred_fallthru
    _
  // Predicated region
  $region10: #{encoder_forward.2} parent=0 // pred_check
    _
  $region11: #{encoder_forward.2} parent=0 // pred_check_branch
    %16 = sbr.rel (0) target = $region13
  $region12: #{encoder_forward.2} parent=0 // pred_region
    _
  $region13: #{encoder_forward.2} parent=0 // pred_fallthru
    _
  // Predicated region
  $region14: #{encoder_forward.2} parent=0 // pred_check
    _
  $region15: #{encoder_forward.2} parent=0 // pred_check_branch
    %18 = sbr.rel (0) target = $region17
  $region16: #{encoder_forward.2} parent=0 // pred_region
    _
  $region17: #{encoder_forward.2} parent=0 // pred_fallthru
    _
  %p20 = scmp.eq.s32.totalorder 0, 0
  // Predicated region
  $region18: #{encoder_forward.2} parent=0 // pred_check
    %p21 = pneg %p20
  $region19: #{encoder_forward.2} parent=0 // pred_check_branch
    %23 = sbr.rel (%p21) target = $region21
  $region20: #{encoder_forward.2} parent=0 // pred_region
    %24 = vst [vmem:[#allocation2] sm:$0xff] 0.0
    %25 = vst [vmem:[#allocation2 + $0x8] sm:$0xff] 0.0
  $region21: #{encoder_forward.2} parent=0 // pred_fallthru
    _
  %v26 = vld [vmem:[%s1] sm:$0xff]
  %v27 = vld [vmem:[%s1 + $0x8] sm:$0xff]
  %v28 = vld [vmem:[%s1 + $0x10] sm:$0xff]
  %v29 = vld [vmem:[%s1 + $0x18] sm:$0xff]
  %v30 = vld [vmem:[%s1 + $0x20] sm:$0xff]
  %v31 = vld [vmem:[%s1 + $0x28] sm:$0xff]
  %v32 = vld [vmem:[%s1 + $0x30] sm:$0xff]
  %v33 = vld [vmem:[%s1 + $0x38] sm:$0xff]
  %v34 = vld [vmem:[%s1 + $0x40] sm:$0xff]
  %v35 = vld [vmem:[%s1 + $0x48] sm:$0xff]
  %v36 = vld [vmem:[%s1 + $0x50] sm:$0xff]
  %v37 = vld [vmem:[%s1 + $0x58] sm:$0xff]
  %v38 = vld [vmem:[%s1 + $0x60] sm:$0xff]
  %v39 = vld [vmem:[%s1 + $0x68] sm:$0xff]
  %v40 = vld [vmem:[%s1 + $0x70] sm:$0xff]
  %v41 = vld [vmem:[%s1 + $0x78] sm:$0xff]
  %v42 = vld [vmem:[%s2] sm:$0xf]
  %v43 = vld [vmem:[%s2 + $0x4] sm:$0xf]
  %v44 = vld [vmem:[%s2 + $0x8] sm:$0xf]
  %v45 = vld [vmem:[%s2 + $0xc] sm:$0xf]
  %v46 = vld [vmem:[%s2 + $0x10] sm:$0xf]
  %v47 = vld [vmem:[%s2 + $0x14] sm:$0xf]
  %v48 = vld [vmem:[%s2 + $0x18] sm:$0xf]
  %v49 = vld [vmem:[%s2 + $0x1c] sm:$0xf]
  %v50 = vld [vmem:[%s2 + $0x20] sm:$0xf]
  %v51 = vld [vmem:[%s2 + $0x24] sm:$0xf]
  %v52 = vld [vmem:[%s2 + $0x28] sm:$0xf]
  %v53 = vld [vmem:[%s2 + $0x2c] sm:$0xf]
  %v54 = vld [vmem:[%s2 + $0x30] sm:$0xf]
  %v55 = vld [vmem:[%s2 + $0x34] sm:$0xf]
  %v56 = vld [vmem:[%s2 + $0x38] sm:$0xf]
  %v57 = vld [vmem:[%s2 + $0x3c] sm:$0xf]
  %v58 = vld [vmem:[%s3] sm:$0x1]
  %v60 = vlaneseq
  %v61 = vshrl.u32 %v60, 7
  %v62 = vsub.s32 0, %v61
  %v63 = vrot.slane %v58, %v62
  %v65 = vld [vmem:[#allocation2] sm:$0xff]
  %v66 = vld [vmem:[#allocation2 + $0x8] sm:$0xff]
  %v67 = vld [vmem:[%s0] sm:$0xff]
  %v68 = vld [vmem:[%s0 + $0x8] sm:$0xf]
  %v69 = vld [vmem:[%s0 + $0xc] sm:$0xff]
  %v70 = vld [vmem:[%s0 + $0x14] sm:$0xf]
  %v71 = vpack.c.bf16 %v66, %v65
  %v88 = vunpack.c.l.b16 %v26
  %v89 = vunpack.c.h.b16 %v26
  %v90 = vunpack.c.l.b16 %v27
  %v91 = vunpack.c.h.b16 %v27
  %v92 = vunpack.c.l.b16 %v28
  %v93 = vunpack.c.h.b16 %v28
  %v94 = vunpack.c.l.b16 %v29
  %v95 = vunpack.c.h.b16 %v29
  %v96 = vunpack.c.l.b16 %v30
  %v97 = vunpack.c.h.b16 %v30
  %v98 = vunpack.c.l.b16 %v31
  %v99 = vunpack.c.h.b16 %v31
  %v100 = vunpack.c.l.b16 %v32
  %v101 = vunpack.c.h.b16 %v32
  %v102 = vunpack.c.l.b16 %v33
  %v103 = vunpack.c.h.b16 %v33
  %v104 = vunpack.c.l.b16 %v34
  %v105 = vunpack.c.h.b16 %v34
  %v106 = vunpack.c.l.b16 %v35
  %v107 = vunpack.c.h.b16 %v35
  %v108 = vunpack.c.l.b16 %v36
  %v109 = vunpack.c.h.b16 %v36
  %v110 = vunpack.c.l.b16 %v37
  %v111 = vunpack.c.h.b16 %v37
  %v112 = vunpack.c.l.b16 %v38
  %v113 = vunpack.c.h.b16 %v38
  %v114 = vunpack.c.l.b16 %v39
  %v115 = vunpack.c.h.b16 %v39
  %v116 = vunpack.c.l.b16 %v40
  %v117 = vunpack.c.h.b16 %v40
  %v118 = vunpack.c.l.b16 %v41
  %v119 = vunpack.c.h.b16 %v41
  %v120 = vpack.c.b16 %v90, %v88
  %v121 = vpack.c.b16 %v91, %v89
  %v122 = vpack.c.b16 %v94, %v92
  %v123 = vpack.c.b16 %v95, %v93
  %v124 = vpack.c.b16 %v98, %v96
  %v125 = vpack.c.b16 %v99, %v97
  %v126 = vpack.c.b16 %v102, %v100
  %v127 = vpack.c.b16 %v103, %v101
  %v128 = vpack.c.b16 %v106, %v104
  %v129 = vpack.c.b16 %v107, %v105
  %v130 = vpack.c.b16 %v110, %v108
  %v131 = vpack.c.b16 %v111, %v109
  %v132 = vpack.c.b16 %v114, %v112
  %v133 = vpack.c.b16 %v115, %v113
  %v134 = vpack.c.b16 %v118, %v116
  %v135 = vpack.c.b16 %v119, %v117
  %152 = vmatprep.subr.bf16.mxu0 %v135
  %153 = vmatpush1.bf16.msra.mxu0 %v134
  %154 = vmatprep.subr.bf16.mxu0 %v133
  %155 = vmatpush1.bf16.msra.mxu0 %v132
  %156 = vmatprep.subr.bf16.mxu0 %v131
  %157 = vmatpush1.bf16.msra.mxu0 %v130
  %158 = vmatprep.subr.bf16.mxu0 %v129
  %159 = vmatpush1.bf16.msra.mxu0 %v128
  %160 = vmatprep.subr.bf16.mxu0 %v127
  %161 = vmatpush1.bf16.msra.mxu0 %v126
  %162 = vmatprep.subr.bf16.mxu0 %v125
  %163 = vmatpush1.bf16.msra.mxu0 %v124
  %164 = vmatprep.subr.bf16.mxu0 %v123
  %165 = vmatpush1.bf16.msra.mxu0 %v122
  %166 = vmatprep.subr.bf16.mxu0 %v121
  %167 = vmatpush1.bf16.msra.mxu0 %v120
  %168 = vmatprep.subr.bf16.mxu0 0
  %169 = vmatpush2.bf16.msra.mxu0 0
  %170 = vmatprep.subr.bf16.mxu0 0
  %171 = vmatpush2.bf16.msra.mxu0 0
  %172 = vmatprep.subr.bf16.mxu0 0
  %173 = vmatpush2.bf16.msra.mxu0 0
  %174 = vmatprep.subr.bf16.mxu0 0
  %175 = vmatpush2.bf16.msra.mxu0 0
  %176 = vmatprep.subr.bf16.mxu0 0
  %177 = vmatpush2.bf16.msra.mxu0 0
  %178 = vmatprep.subr.bf16.mxu0 0
  %179 = vmatpush2.bf16.msra.mxu0 0
  %180 = vmatprep.subr.bf16.mxu0 0
  %181 = vmatpush2.bf16.msra.mxu0 0
  %182 = vmatprep.subr.bf16.mxu0 0
  %183 = vmatpush2.bf16.msra.mxu0 0
  %184 = vmatprep.mubr.bf16.mxu0 0
  %185 = vmatmul.mubr.bf16.gmra.mxu0 %v71
  %v186 = vpop.f32.mrf.mxu0
  %v187 = vadd.f32 0.0, %v186
  %v188 = vpop.f32.mrf.mxu0
  %v189 = vadd.f32 0.0, %v188
  %v190 = vpop.f32.mrf.mxu0
  %v191 = vadd.f32 0.0, %v190
  %v192 = vpop.f32.mrf.mxu0
  %v193 = vadd.f32 0.0, %v192
  %194 = vdwg.mxu0
  %v195 = vunpack.c.l.bf16 %v67
  %v196 = vunpack.c.l.bf16 %v69
  %v197 = vadd.f32 %v195, %v187
  %v198 = vadd.f32 %v196, %v191
  %v199 = vxor.u32 %v197, 2147483648
  %v200 = vxor.u32 %v198, 2147483648
  %v201 = vmul.f32 %v199, 1.442695
  %v202 = vpow.pop %v201
  %v203 = vmul.f32 %v200, 1.442695
  %v204 = vpow.pop %v203
  %v205 = vadd.f32 %v202, 1.0
  %v206 = vadd.f32 %v204, 1.0
  %v207 = vrcp.pop %v205
  %v208 = vmul.f32 1.0, %v207
  %v209 = vrcp.pop %v206
  %v210 = vmul.f32 1.0, %v209
  %v213 = vrot.slane %v67, 4
  %v214 = vrot.slane %v69, 4
  %v217 = vunpack.c.l.bf16 %v213
  %v218 = vunpack.c.l.bf16 %v214
  %v219 = vadd.f32 %v217, %v189
  %v220 = vadd.f32 %v218, %v193
  %v221 = vxor.u32 %v219, 2147483648
  %v222 = vxor.u32 %v220, 2147483648
  %v223 = vmul.f32 %v221, 1.442695
  %v224 = vpow.pop %v223
  %v225 = vmul.f32 %v222, 1.442695
  %v226 = vpow.pop %v225
  %v227 = vadd.f32 %v224, 1.0
  %v228 = vadd.f32 %v226, 1.0
  %v229 = vrcp.pop %v227
  %v230 = vmul.f32 1.0, %v229
  %v231 = vrcp.pop %v228
  %v232 = vmul.f32 1.0, %v231
  %v233 = vunpack.c.l.bf16 %v68
  %v234 = vunpack.c.l.bf16 %v70
  %v251 = vunpack.c.l.b16 %v42
  %v252 = vunpack.c.l.b16 %v43
  %v253 = vunpack.c.l.b16 %v44
  %v254 = vunpack.c.l.b16 %v45
  %v255 = vunpack.c.l.b16 %v46
  %v256 = vunpack.c.l.b16 %v47
  %v257 = vunpack.c.l.b16 %v48
  %v258 = vunpack.c.l.b16 %v49
  %v259 = vunpack.c.l.b16 %v50
  %v260 = vunpack.c.l.b16 %v51
  %v261 = vunpack.c.l.b16 %v52
  %v262 = vunpack.c.l.b16 %v53
  %v263 = vunpack.c.l.b16 %v54
  %v264 = vunpack.c.l.b16 %v55
  %v265 = vunpack.c.l.b16 %v56
  %v266 = vunpack.c.l.b16 %v57
  %v267 = vpack.c.b16 %v252, %v251
  %v268 = vpack.c.b16 %v254, %v253
  %v269 = vpack.c.b16 %v256, %v255
  %v270 = vpack.c.b16 %v258, %v257
  %v271 = vpack.c.b16 %v260, %v259
  %v272 = vpack.c.b16 %v262, %v261
  %v273 = vpack.c.b16 %v264, %v263
  %v274 = vpack.c.b16 %v266, %v265
  %283 = vmatprep.subr.bf16.mxu0 0
  %284 = vmatpush1.bf16.msra.mxu0 %v274
  %285 = vmatprep.subr.bf16.mxu0 0
  %286 = vmatpush1.bf16.msra.mxu0 %v273
  %287 = vmatprep.subr.bf16.mxu0 0
  %288 = vmatpush1.bf16.msra.mxu0 %v272
  %289 = vmatprep.subr.bf16.mxu0 0
  %290 = vmatpush1.bf16.msra.mxu0 %v271
  %291 = vmatprep.subr.bf16.mxu0 0
  %292 = vmatpush1.bf16.msra.mxu0 %v270
  %293 = vmatprep.subr.bf16.mxu0 0
  %294 = vmatpush1.bf16.msra.mxu0 %v269
  %295 = vmatprep.subr.bf16.mxu0 0
  %296 = vmatpush1.bf16.msra.mxu0 %v268
  %297 = vmatprep.subr.bf16.mxu0 0
  %298 = vmatpush1.bf16.msra.mxu0 %v267
  %299 = vmatprep.subr.bf16.mxu0 0
  %300 = vmatpush2.bf16.msra.mxu0 0
  %301 = vmatprep.subr.bf16.mxu0 0
  %302 = vmatpush2.bf16.msra.mxu0 0
  %303 = vmatprep.subr.bf16.mxu0 0
  %304 = vmatpush2.bf16.msra.mxu0 0
  %305 = vmatprep.subr.bf16.mxu0 0
  %306 = vmatpush2.bf16.msra.mxu0 0
  %307 = vmatprep.subr.bf16.mxu0 0
  %308 = vmatpush2.bf16.msra.mxu0 0
  %309 = vmatprep.subr.bf16.mxu0 0
  %310 = vmatpush2.bf16.msra.mxu0 0
  %311 = vmatprep.subr.bf16.mxu0 0
  %312 = vmatpush2.bf16.msra.mxu0 0
  %313 = vmatprep.subr.bf16.mxu0 0
  %314 = vmatpush2.bf16.msra.mxu0 0
  %315 = vmatprep.mubr.bf16.mxu0 0
  %316 = vmatmul.mubr.bf16.gmra.mxu0 %v71
  %v317 = vpop.f32.mrf.mxu0
  %v318 = vadd.f32 %v63, %v317
  %v319 = vpop.f32.mrf.mxu0
  %v320 = vpop.f32.mrf.mxu0
  %v321 = vadd.f32 %v63, %v320
  %v322 = vpop.f32.mrf.mxu0
  %323 = vdwg.mxu0
  %v324 = vmul.f32 %v208, %v318
  %v325 = vmul.f32 %v210, %v321
  %v326 = vadd.f32 %v233, %v324
  %v327 = vadd.f32 %v234, %v325
  %v328 = vtanh.pop %v326
  %v329 = vtanh.pop %v327
  %v330 = vsub.f32 %v65, %v328
  %v331 = vsub.f32 %v66, %v329
  %v332 = vmul.f32 %v230, %v330
  %v333 = vmul.f32 %v232, %v331
  %v334 = vadd.f32 %v328, %v332
  %v335 = vadd.f32 %v329, %v333
  %v336 = vpack.c.bf16 %v335, %v334
  %v338 = vunpack.c.l.b16 %v336
  %v339 = vunpack.c.h.b16 %v336
  %v340 = vpack.c.b16 %v338, %v338
  %v341 = vpack.c.b16 %v339, %v339
  %344 = vst [vmem:[%s4] sm:$0xf] %v340
  %345 = vst [vmem:[%s4 + $0x4] sm:$0xf] %v341
  %s346 = scalar_lea.vmem %s0, 24
  %v347 = vld [vmem:[%s346] sm:$0xff]
  %v348 = vld [vmem:[%s346 + $0x8] sm:$0xf]
  %v349 = vld [vmem:[%s346 + $0xc] sm:$0xff]
  %v350 = vld [vmem:[%s346 + $0x14] sm:$0xf]
  %351 = vmatprep.subr.bf16.mxu0 %v135
  %352 = vmatpush1.bf16.msra.mxu0 %v134
  %353 = vmatprep.subr.bf16.mxu0 %v133
  %354 = vmatpush1.bf16.msra.mxu0 %v132
  %355 = vmatprep.subr.bf16.mxu0 %v131
  %356 = vmatpush1.bf16.msra.mxu0 %v130
  %357 = vmatprep.subr.bf16.mxu0 %v129
  %358 = vmatpush1.bf16.msra.mxu0 %v128
  %359 = vmatprep.subr.bf16.mxu0 %v127
  %360 = vmatpush1.bf16.msra.mxu0 %v126
  %361 = vmatprep.subr.bf16.mxu0 %v125
  %362 = vmatpush1.bf16.msra.mxu0 %v124
  %363 = vmatprep.subr.bf16.mxu0 %v123
  %364 = vmatpush1.bf16.msra.mxu0 %v122
  %365 = vmatprep.subr.bf16.mxu0 %v121
  %366 = vmatpush1.bf16.msra.mxu0 %v120
  %367 = vmatprep.subr.bf16.mxu0 0
  %368 = vmatpush2.bf16.msra.mxu0 0
  %369 = vmatprep.subr.bf16.mxu0 0
  %370 = vmatpush2.bf16.msra.mxu0 0
  %371 = vmatprep.subr.bf16.mxu0 0
  %372 = vmatpush2.bf16.msra.mxu0 0
  %373 = vmatprep.subr.bf16.mxu0 0
  %374 = vmatpush2.bf16.msra.mxu0 0
  %375 = vmatprep.subr.bf16.mxu0 0
  %376 = vmatpush2.bf16.msra.mxu0 0
  %377 = vmatprep.subr.bf16.mxu0 0
  %378 = vmatpush2.bf16.msra.mxu0 0
  %379 = vmatprep.subr.bf16.mxu0 0
  %380 = vmatpush2.bf16.msra.mxu0 0
  %381 = vmatprep.subr.bf16.mxu0 0
  %382 = vmatpush2.bf16.msra.mxu0 0
  %383 = vmatprep.mubr.bf16.mxu0 0
  %384 = vmatmul.mubr.bf16.gmra.mxu0 %v336
  %v385 = vpop.f32.mrf.mxu0
  %v386 = vadd.f32 0.0, %v385
  %v387 = vpop.f32.mrf.mxu0
  %v388 = vadd.f32 0.0, %v387
  %v389 = vpop.f32.mrf.mxu0
  %v390 = vadd.f32 0.0, %v389
  %v391 = vpop.f32.mrf.mxu0
  %v392 = vadd.f32 0.0, %v391
  %393 = vdwg.mxu0
  %v394 = vunpack.c.l.bf16 %v347
  %v395 = vunpack.c.l.bf16 %v349
  %v396 = vadd.f32 %v394, %v386
  %v397 = vadd.f32 %v395, %v390
  %v398 = vxor.u32 %v396, 2147483648
  %v399 = vxor.u32 %v397, 2147483648
  %v400 = vmul.f32 %v398, 1.442695
  %v401 = vpow.pop %v400
  %v402 = vmul.f32 %v399, 1.442695
  %v403 = vpow.pop %v402
  %v404 = vadd.f32 %v401, 1.0
  %v405 = vadd.f32 %v403, 1.0
  %v406 = vrcp.pop %v404
  %v407 = vmul.f32 1.0, %v406
  %v408 = vrcp.pop %v405
  %v409 = vmul.f32 1.0, %v408
  %v412 = vrot.slane %v347, 4
  %v413 = vrot.slane %v349, 4
  %v416 = vunpack.c.l.bf16 %v412
  %v417 = vunpack.c.l.bf16 %v413
  %v418 = vadd.f32 %v416, %v388
  %v419 = vadd.f32 %v417, %v392
  %v420 = vxor.u32 %v418, 2147483648
  %v421 = vxor.u32 %v419, 2147483648
  %v422 = vmul.f32 %v420, 1.442695
  %v423 = vpow.pop %v422
  %v424 = vmul.f32 %v421, 1.442695
  %v425 = vpow.pop %v424
  %v426 = vadd.f32 %v423, 1.0
  %v427 = vadd.f32 %v425, 1.0
  %v428 = vrcp.pop %v426
  %v429 = vmul.f32 1.0, %v428
  %v430 = vrcp.pop %v427
  %v431 = vmul.f32 1.0, %v430
  %v432 = vunpack.c.l.bf16 %v348
  %v433 = vunpack.c.l.bf16 %v350
  %434 = vmatprep.subr.bf16.mxu0 0
  %435 = vmatpush1.bf16.msra.mxu0 %v274
  %436 = vmatprep.subr.bf16.mxu0 0
  %437 = vmatpush1.bf16.msra.mxu0 %v273
  %438 = vmatprep.subr.bf16.mxu0 0
  %439 = vmatpush1.bf16.msra.mxu0 %v272
  %440 = vmatprep.subr.bf16.mxu0 0
  %441 = vmatpush1.bf16.msra.mxu0 %v271
  %442 = vmatprep.subr.bf16.mxu0 0
  %443 = vmatpush1.bf16.msra.mxu0 %v270
  %444 = vmatprep.subr.bf16.mxu0 0
  %445 = vmatpush1.bf16.msra.mxu0 %v269
  %446 = vmatprep.subr.bf16.mxu0 0
  %447 = vmatpush1.bf16.msra.mxu0 %v268
  %448 = vmatprep.subr.bf16.mxu0 0
  %449 = vmatpush1.bf16.msra.mxu0 %v267
  %450 = vmatprep.subr.bf16.mxu0 0
  %451 = vmatpush2.bf16.msra.mxu0 0
  %452 = vmatprep.subr.bf16.mxu0 0
  %453 = vmatpush2.bf16.msra.mxu0 0
  %454 = vmatprep.subr.bf16.mxu0 0
  %455 = vmatpush2.bf16.msra.mxu0 0
  %456 = vmatprep.subr.bf16.mxu0 0
  %457 = vmatpush2.bf16.msra.mxu0 0
  %458 = vmatprep.subr.bf16.mxu0 0
  %459 = vmatpush2.bf16.msra.mxu0 0
  %460 = vmatprep.subr.bf16.mxu0 0
  %461 = vmatpush2.bf16.msra.mxu0 0
  %462 = vmatprep.subr.bf16.mxu0 0
  %463 = vmatpush2.bf16.msra.mxu0 0
  %464 = vmatprep.subr.bf16.mxu0 0
  %465 = vmatpush2.bf16.msra.mxu0 0
  %466 = vmatprep.mubr.bf16.mxu0 0
  %467 = vmatmul.mubr.bf16.gmra.mxu0 %v336
  %v468 = vpop.f32.mrf.mxu0
  %v469 = vadd.f32 %v63, %v468
  %v470 = vpop.f32.mrf.mxu0
  %v471 = vpop.f32.mrf.mxu0
  %v472 = vadd.f32 %v63, %v471
  %v473 = vpop.f32.mrf.mxu0
  %474 = vdwg.mxu0
  %v475 = vmul.f32 %v407, %v469
  %v476 = vmul.f32 %v409, %v472
  %v477 = vadd.f32 %v432, %v475
  %v478 = vadd.f32 %v433, %v476
  %v479 = vtanh.pop %v477
  %v480 = vtanh.pop %v478
  %v481 = vsub.f32 %v334, %v479
  %v482 = vsub.f32 %v335, %v480
  %v483 = vmul.f32 %v429, %v481
  %v484 = vmul.f32 %v431, %v482
  %v485 = vadd.f32 %v479, %v483
  %v486 = vadd.f32 %v480, %v484
  %v487 = vpack.c.bf16 %v486, %v485
  %v489 = vunpack.c.l.b16 %v487
  %v490 = vunpack.c.h.b16 %v487
  %v491 = vpack.c.b16 %v489, %v489
  %v492 = vpack.c.b16 %v490, %v490
  %s495 = scalar_lea.vmem %s4, 8
  %496 = vst [vmem:[%s495] sm:$0xf] %v491
  %497 = vst [vmem:[%s495 + $0x4] sm:$0xf] %v492
  %s498 = scalar_lea.vmem %s0, 48
  %v499 = vld [vmem:[%s498] sm:$0xff]
  %v500 = vld [vmem:[%s498 + $0x8] sm:$0xf]
  %v501 = vld [vmem:[%s498 + $0xc] sm:$0xff]
  %v502 = vld [vmem:[%s498 + $0x14] sm:$0xf]
  %503 = vmatprep.subr.bf16.mxu0 %v135
  %504 = vmatpush1.bf16.msra.mxu0 %v134
  %505 = vmatprep.subr.bf16.mxu0 %v133
  %506 = vmatpush1.bf16.msra.mxu0 %v132
  %507 = vmatprep.subr.bf16.mxu0 %v131
  %508 = vmatpush1.bf16.msra.mxu0 %v130
  %509 = vmatprep.subr.bf16.mxu0 %v129
  %510 = vmatpush1.bf16.msra.mxu0 %v128
  %511 = vmatprep.subr.bf16.mxu0 %v127
  %512 = vmatpush1.bf16.msra.mxu0 %v126
  %513 = vmatprep.subr.bf16.mxu0 %v125
  %514 = vmatpush1.bf16.msra.mxu0 %v124
  %515 = vmatprep.subr.bf16.mxu0 %v123
  %516 = vmatpush1.bf16.msra.mxu0 %v122
  %517 = vmatprep.subr.bf16.mxu0 %v121
  %518 = vmatpush1.bf16.msra.mxu0 %v120
  %519 = vmatprep.subr.bf16.mxu0 0
  %520 = vmatpush2.bf16.msra.mxu0 0
  %521 = vmatprep.subr.bf16.mxu0 0
  %522 = vmatpush2.bf16.msra.mxu0 0
  %523 = vmatprep.subr.bf16.mxu0 0
  %524 = vmatpush2.bf16.msra.mxu0 0
  %525 = vmatprep.subr.bf16.mxu0 0
  %526 = vmatpush2.bf16.msra.mxu0 0
  %527 = vmatprep.subr.bf16.mxu0 0
  %528 = vmatpush2.bf16.msra.mxu0 0
  %529 = vmatprep.subr.bf16.mxu0 0
  %530 = vmatpush2.bf16.msra.mxu0 0
  %531 = vmatprep.subr.bf16.mxu0 0
  %532 = vmatpush2.bf16.msra.mxu0 0
  %533 = vmatprep.subr.bf16.mxu0 0
  %534 = vmatpush2.bf16.msra.mxu0 0
  %535 = vmatprep.mubr.bf16.mxu0 0
  %536 = vmatmul.mubr.bf16.gmra.mxu0 %v487
  %v537 = vpop.f32.mrf.mxu0
  %v538 = vadd.f32 0.0, %v537
  %v539 = vpop.f32.mrf.mxu0
  %v540 = vadd.f32 0.0, %v539
  %v541 = vpop.f32.mrf.mxu0
  %v542 = vadd.f32 0.0, %v541
  %v543 = vpop.f32.mrf.mxu0
  %v544 = vadd.f32 0.0, %v543
  %545 = vdwg.mxu0
  %v546 = vunpack.c.l.bf16 %v499
  %v547 = vunpack.c.l.bf16 %v501
  %v548 = vadd.f32 %v546, %v538
  %v549 = vadd.f32 %v547, %v542
  %v550 = vxor.u32 %v548, 2147483648
  %v551 = vxor.u32 %v549, 2147483648
  %v552 = vmul.f32 %v550, 1.442695
  %v553 = vpow.pop %v552
  %v554 = vmul.f32 %v551, 1.442695
  %v555 = vpow.pop %v554
  %v556 = vadd.f32 %v553, 1.0
  %v557 = vadd.f32 %v555, 1.0
  %v558 = vrcp.pop %v556
  %v559 = vmul.f32 1.0, %v558
  %v560 = vrcp.pop %v557
  %v561 = vmul.f32 1.0, %v560
  %v564 = vrot.slane %v499, 4
  %v565 = vrot.slane %v501, 4
  %v568 = vunpack.c.l.bf16 %v564
  %v569 = vunpack.c.l.bf16 %v565
  %v570 = vadd.f32 %v568, %v540
  %v571 = vadd.f32 %v569, %v544
  %v572 = vxor.u32 %v570, 2147483648
  %v573 = vxor.u32 %v571, 2147483648
  %v574 = vmul.f32 %v572, 1.442695
  %v575 = vpow.pop %v574
  %v576 = vmul.f32 %v573, 1.442695
  %v577 = vpow.pop %v576
  %v578 = vadd.f32 %v575, 1.0
  %v579 = vadd.f32 %v577, 1.0
  %v580 = vrcp.pop %v578
  %v581 = vmul.f32 1.0, %v580
  %v582 = vrcp.pop %v579
  %v583 = vmul.f32 1.0, %v582
  %v584 = vunpack.c.l.bf16 %v500
  %v585 = vunpack.c.l.bf16 %v502
  %586 = vmatprep.subr.bf16.mxu0 0
  %587 = vmatpush1.bf16.msra.mxu0 %v274
  %588 = vmatprep.subr.bf16.mxu0 0
  %589 = vmatpush1.bf16.msra.mxu0 %v273
  %590 = vmatprep.subr.bf16.mxu0 0
  %591 = vmatpush1.bf16.msra.mxu0 %v272
  %592 = vmatprep.subr.bf16.mxu0 0
  %593 = vmatpush1.bf16.msra.mxu0 %v271
  %594 = vmatprep.subr.bf16.mxu0 0
  %595 = vmatpush1.bf16.msra.mxu0 %v270
  %596 = vmatprep.subr.bf16.mxu0 0
  %597 = vmatpush1.bf16.msra.mxu0 %v269
  %598 = vmatprep.subr.bf16.mxu0 0
  %599 = vmatpush1.bf16.msra.mxu0 %v268
  %600 = vmatprep.subr.bf16.mxu0 0
  %601 = vmatpush1.bf16.msra.mxu0 %v267
  %602 = vmatprep.subr.bf16.mxu0 0
  %603 = vmatpush2.bf16.msra.mxu0 0
  %604 = vmatprep.subr.bf16.mxu0 0
  %605 = vmatpush2.bf16.msra.mxu0 0
  %606 = vmatprep.subr.bf16.mxu0 0
  %607 = vmatpush2.bf16.msra.mxu0 0
  %608 = vmatprep.subr.bf16.mxu0 0
  %609 = vmatpush2.bf16.msra.mxu0 0
  %610 = vmatprep.subr.bf16.mxu0 0
  %611 = vmatpush2.bf16.msra.mxu0 0
  %612 = vmatprep.subr.bf16.mxu0 0
  %613 = vmatpush2.bf16.msra.mxu0 0
  %614 = vmatprep.subr.bf16.mxu0 0
  %615 = vmatpush2.bf16.msra.mxu0 0
  %616 = vmatprep.subr.bf16.mxu0 0
  %617 = vmatpush2.bf16.msra.mxu0 0
  %618 = vmatprep.mubr.bf16.mxu0 0
  %619 = vmatmul.mubr.bf16.gmra.mxu0 %v487
  %v620 = vpop.f32.mrf.mxu0
  %v621 = vadd.f32 %v63, %v620
  %v622 = vpop.f32.mrf.mxu0
  %v623 = vpop.f32.mrf.mxu0
  %v624 = vadd.f32 %v63, %v623
  %v625 = vpop.f32.mrf.mxu0
  %626 = vdwg.mxu0
  %v627 = vmul.f32 %v559, %v621
  %v628 = vmul.f32 %v561, %v624
  %v629 = vadd.f32 %v584, %v627
  %v630 = vadd.f32 %v585, %v628
  %v631 = vtanh.pop %v629
  %v632 = vtanh.pop %v630
  %v633 = vsub.f32 %v485, %v631
  %v634 = vsub.f32 %v486, %v632
  %v635 = vmul.f32 %v581, %v633
  %v636 = vmul.f32 %v583, %v634
  %v637 = vadd.f32 %v631, %v635
  %v638 = vadd.f32 %v632, %v636
  %v639 = vpack.c.bf16 %v638, %v637
  %v641 = vunpack.c.l.b16 %v639
  %v642 = vunpack.c.h.b16 %v639
  %v643 = vpack.c.b16 %v641, %v641
  %v644 = vpack.c.b16 %v642, %v642
  %s647 = scalar_lea.vmem %s4, 16
  %648 = vst [vmem:[%s647] sm:$0xf] %v643
  %649 = vst [vmem:[%s647 + $0x4] sm:$0xf] %v644
  %s650 = scalar_lea.vmem %s0, 72
  %v651 = vld [vmem:[%s650] sm:$0xff]
  %v652 = vld [vmem:[%s650 + $0x8] sm:$0xf]
  %v653 = vld [vmem:[%s650 + $0xc] sm:$0xff]
  %v654 = vld [vmem:[%s650 + $0x14] sm:$0xf]
  %655 = vmatprep.subr.bf16.mxu0 %v135
  %656 = vmatpush1.bf16.msra.mxu0 %v134
  %657 = vmatprep.subr.bf16.mxu0 %v133
  %658 = vmatpush1.bf16.msra.mxu0 %v132
  %659 = vmatprep.subr.bf16.mxu0 %v131
  %660 = vmatpush1.bf16.msra.mxu0 %v130
  %661 = vmatprep.subr.bf16.mxu0 %v129
  %662 = vmatpush1.bf16.msra.mxu0 %v128
  %663 = vmatprep.subr.bf16.mxu0 %v127
  %664 = vmatpush1.bf16.msra.mxu0 %v126
  %665 = vmatprep.subr.bf16.mxu0 %v125
  %666 = vmatpush1.bf16.msra.mxu0 %v124
  %667 = vmatprep.subr.bf16.mxu0 %v123
  %668 = vmatpush1.bf16.msra.mxu0 %v122
  %669 = vmatprep.subr.bf16.mxu0 %v121
  %670 = vmatpush1.bf16.msra.mxu0 %v120
  %671 = vmatprep.subr.bf16.mxu0 0
  %672 = vmatpush2.bf16.msra.mxu0 0
  %673 = vmatprep.subr.bf16.mxu0 0
  %674 = vmatpush2.bf16.msra.mxu0 0
  %675 = vmatprep.subr.bf16.mxu0 0
  %676 = vmatpush2.bf16.msra.mxu0 0
  %677 = vmatprep.subr.bf16.mxu0 0
  %678 = vmatpush2.bf16.msra.mxu0 0
  %679 = vmatprep.subr.bf16.mxu0 0
  %680 = vmatpush2.bf16.msra.mxu0 0
  %681 = vmatprep.subr.bf16.mxu0 0
  %682 = vmatpush2.bf16.msra.mxu0 0
  %683 = vmatprep.subr.bf16.mxu0 0
  %684 = vmatpush2.bf16.msra.mxu0 0
  %685 = vmatprep.subr.bf16.mxu0 0
  %686 = vmatpush2.bf16.msra.mxu0 0
  %687 = vmatprep.mubr.bf16.mxu0 0
  %688 = vmatmul.mubr.bf16.gmra.mxu0 %v639
  %v689 = vpop.f32.mrf.mxu0
  %v690 = vadd.f32 0.0, %v689
  %v691 = vpop.f32.mrf.mxu0
  %v692 = vadd.f32 0.0, %v691
  %v693 = vpop.f32.mrf.mxu0
  %v694 = vadd.f32 0.0, %v693
  %v695 = vpop.f32.mrf.mxu0
  %v696 = vadd.f32 0.0, %v695
  %697 = vdwg.mxu0
  %v698 = vunpack.c.l.bf16 %v651
  %v699 = vunpack.c.l.bf16 %v653
  %v700 = vadd.f32 %v698, %v690
  %v701 = vadd.f32 %v699, %v694
  %v702 = vxor.u32 %v700, 2147483648
  %v703 = vxor.u32 %v701, 2147483648
  %v704 = vmul.f32 %v702, 1.442695
  %v705 = vpow.pop %v704
  %v706 = vmul.f32 %v703, 1.442695
  %v707 = vpow.pop %v706
  %v708 = vadd.f32 %v705, 1.0
  %v709 = vadd.f32 %v707, 1.0
  %v710 = vrcp.pop %v708
  %v711 = vmul.f32 1.0, %v710
  %v712 = vrcp.pop %v709
  %v713 = vmul.f32 1.0, %v712
  %v716 = vrot.slane %v651, 4
  %v717 = vrot.slane %v653, 4
  %v720 = vunpack.c.l.bf16 %v716
  %v721 = vunpack.c.l.bf16 %v717
  %v722 = vadd.f32 %v720, %v692
  %v723 = vadd.f32 %v721, %v696
  %v724 = vxor.u32 %v722, 2147483648
  %v725 = vxor.u32 %v723, 2147483648
  %v726 = vmul.f32 %v724, 1.442695
  %v727 = vpow.pop %v726
  %v728 = vmul.f32 %v725, 1.442695
  %v729 = vpow.pop %v728
  %v730 = vadd.f32 %v727, 1.0
  %v731 = vadd.f32 %v729, 1.0
  %v732 = vrcp.pop %v730
  %v733 = vmul.f32 1.0, %v732
  %v734 = vrcp.pop %v731
  %v735 = vmul.f32 1.0, %v734
  %v736 = vunpack.c.l.bf16 %v652
  %v737 = vunpack.c.l.bf16 %v654
  %738 = vmatprep.subr.bf16.mxu0 0
  %739 = vmatpush1.bf16.msra.mxu0 %v274
  %740 = vmatprep.subr.bf16.mxu0 0
  %741 = vmatpush1.bf16.msra.mxu0 %v273
  %742 = vmatprep.subr.bf16.mxu0 0
  %743 = vmatpush1.bf16.msra.mxu0 %v272
  %744 = vmatprep.subr.bf16.mxu0 0
  %745 = vmatpush1.bf16.msra.mxu0 %v271
  %746 = vmatprep.subr.bf16.mxu0 0
  %747 = vmatpush1.bf16.msra.mxu0 %v270
  %748 = vmatprep.subr.bf16.mxu0 0
  %749 = vmatpush1.bf16.msra.mxu0 %v269
  %750 = vmatprep.subr.bf16.mxu0 0
  %751 = vmatpush1.bf16.msra.mxu0 %v268
  %752 = vmatprep.subr.bf16.mxu0 0
  %753 = vmatpush1.bf16.msra.mxu0 %v267
  %754 = vmatprep.subr.bf16.mxu0 0
  %755 = vmatpush2.bf16.msra.mxu0 0
  %756 = vmatprep.subr.bf16.mxu0 0
  %757 = vmatpush2.bf16.msra.mxu0 0
  %758 = vmatprep.subr.bf16.mxu0 0
  %759 = vmatpush2.bf16.msra.mxu0 0
  %760 = vmatprep.subr.bf16.mxu0 0
  %761 = vmatpush2.bf16.msra.mxu0 0
  %762 = vmatprep.subr.bf16.mxu0 0
  %763 = vmatpush2.bf16.msra.mxu0 0
  %764 = vmatprep.subr.bf16.mxu0 0
  %765 = vmatpush2.bf16.msra.mxu0 0
  %766 = vmatprep.subr.bf16.mxu0 0
  %767 = vmatpush2.bf16.msra.mxu0 0
  %768 = vmatprep.subr.bf16.mxu0 0
  %769 = vmatpush2.bf16.msra.mxu0 0
  %770 = vmatprep.mubr.bf16.mxu0 0
  %771 = vmatmul.mubr.bf16.gmra.mxu0 %v639
  %v772 = vpop.f32.mrf.mxu0
  %v773 = vadd.f32 %v63, %v772
  %v774 = vpop.f32.mrf.mxu0
  %v775 = vpop.f32.mrf.mxu0
  %v776 = vadd.f32 %v63, %v775
  %v777 = vpop.f32.mrf.mxu0
  %778 = vdwg.mxu0
  %v779 = vmul.f32 %v711, %v773
  %v780 = vmul.f32 %v713, %v776
  %v781 = vadd.f32 %v736, %v779
  %v782 = vadd.f32 %v737, %v780
  %v783 = vtanh.pop %v781
  %v784 = vtanh.pop %v782
  %v785 = vsub.f32 %v637, %v783
  %v786 = vsub.f32 %v638, %v784
  %v787 = vmul.f32 %v733, %v785
  %v788 = vmul.f32 %v735, %v786
  %v789 = vadd.f32 %v783, %v787
  %v790 = vadd.f32 %v784, %v788
  %v791 = vpack.c.bf16 %v790, %v789
  %v793 = vunpack.c.l.b16 %v791
  %v794 = vunpack.c.h.b16 %v791
  %v795 = vpack.c.b16 %v793, %v793
  %v796 = vpack.c.b16 %v794, %v794
  %s799 = scalar_lea.vmem %s4, 24
  %800 = vst [vmem:[%s799] sm:$0xf] %v795
  %801 = vst [vmem:[%s799 + $0x4] sm:$0xf] %v796
  %s802 = scalar_lea.vmem %s0, 96
  %v803 = vld [vmem:[%s802] sm:$0xff]
  %v804 = vld [vmem:[%s802 + $0x8] sm:$0xf]
  %v805 = vld [vmem:[%s802 + $0xc] sm:$0xff]
  %v806 = vld [vmem:[%s802 + $0x14] sm:$0xf]
  %807 = vmatprep.subr.bf16.mxu0 %v135
  %808 = vmatpush1.bf16.msra.mxu0 %v134
  %809 = vmatprep.subr.bf16.mxu0 %v133
  %810 = vmatpush1.bf16.msra.mxu0 %v132
  %811 = vmatprep.subr.bf16.mxu0 %v131
  %812 = vmatpush1.bf16.msra.mxu0 %v130
  %813 = vmatprep.subr.bf16.mxu0 %v129
  %814 = vmatpush1.bf16.msra.mxu0 %v128
  %815 = vmatprep.subr.bf16.mxu0 %v127
  %816 = vmatpush1.bf16.msra.mxu0 %v126
  %817 = vmatprep.subr.bf16.mxu0 %v125
  %818 = vmatpush1.bf16.msra.mxu0 %v124
  %819 = vmatprep.subr.bf16.mxu0 %v123
  %820 = vmatpush1.bf16.msra.mxu0 %v122
  %821 = vmatprep.subr.bf16.mxu0 %v121
  %822 = vmatpush1.bf16.msra.mxu0 %v120
  %823 = vmatprep.subr.bf16.mxu0 0
  %824 = vmatpush2.bf16.msra.mxu0 0
  %825 = vmatprep.subr.bf16.mxu0 0
  %826 = vmatpush2.bf16.msra.mxu0 0
  %827 = vmatprep.subr.bf16.mxu0 0
  %828 = vmatpush2.bf16.msra.mxu0 0
  %829 = vmatprep.subr.bf16.mxu0 0
  %830 = vmatpush2.bf16.msra.mxu0 0
  %831 = vmatprep.subr.bf16.mxu0 0
  %832 = vmatpush2.bf16.msra.mxu0 0
  %833 = vmatprep.subr.bf16.mxu0 0
  %834 = vmatpush2.bf16.msra.mxu0 0
  %835 = vmatprep.subr.bf16.mxu0 0
  %836 = vmatpush2.bf16.msra.mxu0 0
  %837 = vmatprep.subr.bf16.mxu0 0
  %838 = vmatpush2.bf16.msra.mxu0 0
  %839 = vmatprep.mubr.bf16.mxu0 0
  %840 = vmatmul.mubr.bf16.gmra.mxu0 %v791
  %v841 = vpop.f32.mrf.mxu0
  %v842 = vadd.f32 0.0, %v841
  %v843 = vpop.f32.mrf.mxu0
  %v844 = vadd.f32 0.0, %v843
  %v845 = vpop.f32.mrf.mxu0
  %v846 = vadd.f32 0.0, %v845
  %v847 = vpop.f32.mrf.mxu0
  %v848 = vadd.f32 0.0, %v847
  %849 = vdwg.mxu0
  %v850 = vunpack.c.l.bf16 %v803
  %v851 = vunpack.c.l.bf16 %v805
  %v852 = vadd.f32 %v850, %v842
  %v853 = vadd.f32 %v851, %v846
  %v854 = vxor.u32 %v852, 2147483648
  %v855 = vxor.u32 %v853, 2147483648
  %v856 = vmul.f32 %v854, 1.442695
  %v857 = vpow.pop %v856
  %v858 = vmul.f32 %v855, 1.442695
  %v859 = vpow.pop %v858
  %v860 = vadd.f32 %v857, 1.0
  %v861 = vadd.f32 %v859, 1.0
  %v862 = vrcp.pop %v860
  %v863 = vmul.f32 1.0, %v862
  %v864 = vrcp.pop %v861
  %v865 = vmul.f32 1.0, %v864
  %v868 = vrot.slane %v803, 4
  %v869 = vrot.slane %v805, 4
  %v872 = vunpack.c.l.bf16 %v868
  %v873 = vunpack.c.l.bf16 %v869
  %v874 = vadd.f32 %v872, %v844
  %v875 = vadd.f32 %v873, %v848
  %v876 = vxor.u32 %v874, 2147483648
  %v877 = vxor.u32 %v875, 2147483648
  %v878 = vmul.f32 %v876, 1.442695
  %v879 = vpow.pop %v878
  %v880 = vmul.f32 %v877, 1.442695
  %v881 = vpow.pop %v880
  %v882 = vadd.f32 %v879, 1.0
  %v883 = vadd.f32 %v881, 1.0
  %v884 = vrcp.pop %v882
  %v885 = vmul.f32 1.0, %v884
  %v886 = vrcp.pop %v883
  %v887 = vmul.f32 1.0, %v886
  %v888 = vunpack.c.l.bf16 %v804
  %v889 = vunpack.c.l.bf16 %v806
  %890 = vmatprep.subr.bf16.mxu0 0
  %891 = vmatpush1.bf16.msra.mxu0 %v274
  %892 = vmatprep.subr.bf16.mxu0 0
  %893 = vmatpush1.bf16.msra.mxu0 %v273
  %894 = vmatprep.subr.bf16.mxu0 0
  %895 = vmatpush1.bf16.msra.mxu0 %v272
  %896 = vmatprep.subr.bf16.mxu0 0
  %897 = vmatpush1.bf16.msra.mxu0 %v271
  %898 = vmatprep.subr.bf16.mxu0 0
  %899 = vmatpush1.bf16.msra.mxu0 %v270
  %900 = vmatprep.subr.bf16.mxu0 0
  %901 = vmatpush1.bf16.msra.mxu0 %v269
  %902 = vmatprep.subr.bf16.mxu0 0
  %903 = vmatpush1.bf16.msra.mxu0 %v268
  %904 = vmatprep.subr.bf16.mxu0 0
  %905 = vmatpush1.bf16.msra.mxu0 %v267
  %906 = vmatprep.subr.bf16.mxu0 0
  %907 = vmatpush2.bf16.msra.mxu0 0
  %908 = vmatprep.subr.bf16.mxu0 0
  %909 = vmatpush2.bf16.msra.mxu0 0
  %910 = vmatprep.subr.bf16.mxu0 0
  %911 = vmatpush2.bf16.msra.mxu0 0
  %912 = vmatprep.subr.bf16.mxu0 0
  %913 = vmatpush2.bf16.msra.mxu0 0
  %914 = vmatprep.subr.bf16.mxu0 0
  %915 = vmatpush2.bf16.msra.mxu0 0
  %916 = vmatprep.subr.bf16.mxu0 0
  %917 = vmatpush2.bf16.msra.mxu0 0
  %918 = vmatprep.subr.bf16.mxu0 0
  %919 = vmatpush2.bf16.msra.mxu0 0
  %920 = vmatprep.subr.bf16.mxu0 0
  %921 = vmatpush2.bf16.msra.mxu0 0
  %922 = vmatprep.mubr.bf16.mxu0 0
  %923 = vmatmul.mubr.bf16.gmra.mxu0 %v791
  %v924 = vpop.f32.mrf.mxu0
  %v925 = vadd.f32 %v63, %v924
  %v926 = vpop.f32.mrf.mxu0
  %v927 = vpop.f32.mrf.mxu0
  %v928 = vadd.f32 %v63, %v927
  %v929 = vpop.f32.mrf.mxu0
  %930 = vdwg.mxu0
  %v931 = vmul.f32 %v863, %v925
  %v932 = vmul.f32 %v865, %v928
  %v933 = vadd.f32 %v888, %v931
  %v934 = vadd.f32 %v889, %v932
  %v935 = vtanh.pop %v933
  %v936 = vtanh.pop %v934
  %v937 = vsub.f32 %v789, %v935
  %v938 = vsub.f32 %v790, %v936
  %v939 = vmul.f32 %v885, %v937
  %v940 = vmul.f32 %v887, %v938
  %v941 = vadd.f32 %v935, %v939
  %v942 = vadd.f32 %v936, %v940
  %v943 = vpack.c.bf16 %v942, %v941
  %v945 = vunpack.c.l.b16 %v943
  %v946 = vunpack.c.h.b16 %v943
  %v947 = vpack.c.b16 %v945, %v945
  %v948 = vpack.c.b16 %v946, %v946
  %s951 = scalar_lea.vmem %s4, 32
  %952 = vst [vmem:[%s951] sm:$0xf] %v947
  %953 = vst [vmem:[%s951 + $0x4] sm:$0xf] %v948
  %s954 = scalar_lea.vmem %s0, 120
  %v955 = vld [vmem:[%s954] sm:$0xff]
  %v956 = vld [vmem:[%s954 + $0x8] sm:$0xf]
  %v957 = vld [vmem:[%s954 + $0xc] sm:$0xff]
  %v958 = vld [vmem:[%s954 + $0x14] sm:$0xf]
  %959 = vmatprep.subr.bf16.mxu0 %v135
  %960 = vmatpush1.bf16.msra.mxu0 %v134
  %961 = vmatprep.subr.bf16.mxu0 %v133
  %962 = vmatpush1.bf16.msra.mxu0 %v132
  %963 = vmatprep.subr.bf16.mxu0 %v131
  %964 = vmatpush1.bf16.msra.mxu0 %v130
  %965 = vmatprep.subr.bf16.mxu0 %v129
  %966 = vmatpush1.bf16.msra.mxu0 %v128
  %967 = vmatprep.subr.bf16.mxu0 %v127
  %968 = vmatpush1.bf16.msra.mxu0 %v126
  %969 = vmatprep.subr.bf16.mxu0 %v125
  %970 = vmatpush1.bf16.msra.mxu0 %v124
  %971 = vmatprep.subr.bf16.mxu0 %v123
  %972 = vmatpush1.bf16.msra.mxu0 %v122
  %973 = vmatprep.subr.bf16.mxu0 %v121
  %974 = vmatpush1.bf16.msra.mxu0 %v120
  %975 = vmatprep.subr.bf16.mxu0 0
  %976 = vmatpush2.bf16.msra.mxu0 0
  %977 = vmatprep.subr.bf16.mxu0 0
  %978 = vmatpush2.bf16.msra.mxu0 0
  %979 = vmatprep.subr.bf16.mxu0 0
  %980 = vmatpush2.bf16.msra.mxu0 0
  %981 = vmatprep.subr.bf16.mxu0 0
  %982 = vmatpush2.bf16.msra.mxu0 0
  %983 = vmatprep.subr.bf16.mxu0 0
  %984 = vmatpush2.bf16.msra.mxu0 0
  %985 = vmatprep.subr.bf16.mxu0 0
  %986 = vmatpush2.bf16.msra.mxu0 0
  %987 = vmatprep.subr.bf16.mxu0 0
  %988 = vmatpush2.bf16.msra.mxu0 0
  %989 = vmatprep.subr.bf16.mxu0 0
  %990 = vmatpush2.bf16.msra.mxu0 0
  %991 = vmatprep.mubr.bf16.mxu0 0
  %992 = vmatmul.mubr.bf16.gmra.mxu0 %v943
  %v993 = vpop.f32.mrf.mxu0
  %v994 = vadd.f32 0.0, %v993
  %v995 = vpop.f32.mrf.mxu0
  %v996 = vadd.f32 0.0, %v995
  %v997 = vpop.f32.mrf.mxu0
  %v998 = vadd.f32 0.0, %v997
  %v999 = vpop.f32.mrf.mxu0
  %v1000 = vadd.f32 0.0, %v999
  %1001 = vdwg.mxu0
  %v1002 = vunpack.c.l.bf16 %v955
  %v1003 = vunpack.c.l.bf16 %v957
  %v1004 = vadd.f32 %v1002, %v994
  %v1005 = vadd.f32 %v1003, %v998
  %v1006 = vxor.u32 %v1004, 2147483648
  %v1007 = vxor.u32 %v1005, 2147483648
  %v1008 = vmul.f32 %v1006, 1.442695
  %v1009 = vpow.pop %v1008
  %v1010 = vmul.f32 %v1007, 1.442695
  %v1011 = vpow.pop %v1010
  %v1012 = vadd.f32 %v1009, 1.0
  %v1013 = vadd.f32 %v1011, 1.0
  %v1014 = vrcp.pop %v1012
  %v1015 = vmul.f32 1.0, %v1014
  %v1016 = vrcp.pop %v1013
  %v1017 = vmul.f32 1.0, %v1016
  %v1020 = vrot.slane %v955, 4
  %v1021 = vrot.slane %v957, 4
  %v1024 = vunpack.c.l.bf16 %v1020
  %v1025 = vunpack.c.l.bf16 %v1021
  %v1026 = vadd.f32 %v1024, %v996
  %v1027 = vadd.f32 %v1025, %v1000
  %v1028 = vxor.u32 %v1026, 2147483648
  %v1029 = vxor.u32 %v1027, 2147483648
  %v1030 = vmul.f32 %v1028, 1.442695
  %v1031 = vpow.pop %v1030
  %v1032 = vmul.f32 %v1029, 1.442695
  %v1033 = vpow.pop %v1032
  %v1034 = vadd.f32 %v1031, 1.0
  %v1035 = vadd.f32 %v1033, 1.0
  %v1036 = vrcp.pop %v1034
  %v1037 = vmul.f32 1.0, %v1036
  %v1038 = vrcp.pop %v1035
  %v1039 = vmul.f32 1.0, %v1038
  %v1040 = vunpack.c.l.bf16 %v956
  %v1041 = vunpack.c.l.bf16 %v958
  %1042 = vmatprep.subr.bf16.mxu0 0
  %1043 = vmatpush1.bf16.msra.mxu0 %v274
  %1044 = vmatprep.subr.bf16.mxu0 0
  %1045 = vmatpush1.bf16.msra.mxu0 %v273
  %1046 = vmatprep.subr.bf16.mxu0 0
  %1047 = vmatpush1.bf16.msra.mxu0 %v272
  %1048 = vmatprep.subr.bf16.mxu0 0
  %1049 = vmatpush1.bf16.msra.mxu0 %v271
  %1050 = vmatprep.subr.bf16.mxu0 0
  %1051 = vmatpush1.bf16.msra.mxu0 %v270
  %1052 = vmatprep.subr.bf16.mxu0 0
  %1053 = vmatpush1.bf16.msra.mxu0 %v269
  %1054 = vmatprep.subr.bf16.mxu0 0
  %1055 = vmatpush1.bf16.msra.mxu0 %v268
  %1056 = vmatprep.subr.bf16.mxu0 0
  %1057 = vmatpush1.bf16.msra.mxu0 %v267
  %1058 = vmatprep.subr.bf16.mxu0 0
  %1059 = vmatpush2.bf16.msra.mxu0 0
  %1060 = vmatprep.subr.bf16.mxu0 0
  %1061 = vmatpush2.bf16.msra.mxu0 0
  %1062 = vmatprep.subr.bf16.mxu0 0
  %1063 = vmatpush2.bf16.msra.mxu0 0
  %1064 = vmatprep.subr.bf16.mxu0 0
  %1065 = vmatpush2.bf16.msra.mxu0 0
  %1066 = vmatprep.subr.bf16.mxu0 0
  %1067 = vmatpush2.bf16.msra.mxu0 0
  %1068 = vmatprep.subr.bf16.mxu0 0
  %1069 = vmatpush2.bf16.msra.mxu0 0
  %1070 = vmatprep.subr.bf16.mxu0 0
  %1071 = vmatpush2.bf16.msra.mxu0 0
  %1072 = vmatprep.subr.bf16.mxu0 0
  %1073 = vmatpush2.bf16.msra.mxu0 0
  %1074 = vmatprep.mubr.bf16.mxu0 0
  %1075 = vmatmul.mubr.bf16.gmra.mxu0 %v943
  %v1076 = vpop.f32.mrf.mxu0
  %v1077 = vadd.f32 %v63, %v1076
  %v1078 = vpop.f32.mrf.mxu0
  %v1079 = vpop.f32.mrf.mxu0
  %v1080 = vadd.f32 %v63, %v1079
  %v1081 = vpop.f32.mrf.mxu0
  %1082 = vdwg.mxu0
  %v1083 = vmul.f32 %v1015, %v1077
  %v1084 = vmul.f32 %v1017, %v1080
  %v1085 = vadd.f32 %v1040, %v1083
  %v1086 = vadd.f32 %v1041, %v1084
  %v1087 = vtanh.pop %v1085
  %v1088 = vtanh.pop %v1086
  %v1089 = vsub.f32 %v941, %v1087
  %v1090 = vsub.f32 %v942, %v1088
  %v1091 = vmul.f32 %v1037, %v1089
  %v1092 = vmul.f32 %v1039, %v1090
  %v1093 = vadd.f32 %v1087, %v1091
  %v1094 = vadd.f32 %v1088, %v1092
  %v1095 = vpack.c.bf16 %v1094, %v1093
  %v1097 = vunpack.c.l.b16 %v1095
  %v1098 = vunpack.c.h.b16 %v1095
  %v1099 = vpack.c.b16 %v1097, %v1097
  %v1100 = vpack.c.b16 %v1098, %v1098
  %s1103 = scalar_lea.vmem %s4, 40
  %1104 = vst [vmem:[%s1103] sm:$0xf] %v1099
  %1105 = vst [vmem:[%s1103 + $0x4] sm:$0xf] %v1100
  %s1106 = scalar_lea.vmem %s0, 144
  %v1107 = vld [vmem:[%s1106] sm:$0xff]
  %v1108 = vld [vmem:[%s1106 + $0x8] sm:$0xf]
  %v1109 = vld [vmem:[%s1106 + $0xc] sm:$0xff]
  %v1110 = vld [vmem:[%s1106 + $0x14] sm:$0xf]
  %1111 = vmatprep.subr.bf16.mxu0 %v135
  %1112 = vmatpush1.bf16.msra.mxu0 %v134
  %1113 = vmatprep.subr.bf16.mxu0 %v133
  %1114 = vmatpush1.bf16.msra.mxu0 %v132
  %1115 = vmatprep.subr.bf16.mxu0 %v131
  %1116 = vmatpush1.bf16.msra.mxu0 %v130
  %1117 = vmatprep.subr.bf16.mxu0 %v129
  %1118 = vmatpush1.bf16.msra.mxu0 %v128
  %1119 = vmatprep.subr.bf16.mxu0 %v127
  %1120 = vmatpush1.bf16.msra.mxu0 %v126
  %1121 = vmatprep.subr.bf16.mxu0 %v125
  %1122 = vmatpush1.bf16.msra.mxu0 %v124
  %1123 = vmatprep.subr.bf16.mxu0 %v123
  %1124 = vmatpush1.bf16.msra.mxu0 %v122
  %1125 = vmatprep.subr.bf16.mxu0 %v121
  %1126 = vmatpush1.bf16.msra.mxu0 %v120
  %1127 = vmatprep.subr.bf16.mxu0 0
  %1128 = vmatpush2.bf16.msra.mxu0 0
  %1129 = vmatprep.subr.bf16.mxu0 0
  %1130 = vmatpush2.bf16.msra.mxu0 0
  %1131 = vmatprep.subr.bf16.mxu0 0
  %1132 = vmatpush2.bf16.msra.mxu0 0
  %1133 = vmatprep.subr.bf16.mxu0 0
  %1134 = vmatpush2.bf16.msra.mxu0 0
  %1135 = vmatprep.subr.bf16.mxu0 0
  %1136 = vmatpush2.bf16.msra.mxu0 0
  %1137 = vmatprep.subr.bf16.mxu0 0
  %1138 = vmatpush2.bf16.msra.mxu0 0
  %1139 = vmatprep.subr.bf16.mxu0 0
  %1140 = vmatpush2.bf16.msra.mxu0 0
  %1141 = vmatprep.subr.bf16.mxu0 0
  %1142 = vmatpush2.bf16.msra.mxu0 0
  %1143 = vmatprep.mubr.bf16.mxu0 0
  %1144 = vmatmul.mubr.bf16.gmra.mxu0 %v1095
  %v1145 = vpop.f32.mrf.mxu0
  %v1146 = vadd.f32 0.0, %v1145
  %v1147 = vpop.f32.mrf.mxu0
  %v1148 = vadd.f32 0.0, %v1147
  %v1149 = vpop.f32.mrf.mxu0
  %v1150 = vadd.f32 0.0, %v1149
  %v1151 = vpop.f32.mrf.mxu0
  %v1152 = vadd.f32 0.0, %v1151
  %1153 = vdwg.mxu0
  %v1154 = vunpack.c.l.bf16 %v1107
  %v1155 = vunpack.c.l.bf16 %v1109
  %v1156 = vadd.f32 %v1154, %v1146
  %v1157 = vadd.f32 %v1155, %v1150
  %v1158 = vxor.u32 %v1156, 2147483648
  %v1159 = vxor.u32 %v1157, 2147483648
  %v1160 = vmul.f32 %v1158, 1.442695
  %v1161 = vpow.pop %v1160
  %v1162 = vmul.f32 %v1159, 1.442695
  %v1163 = vpow.pop %v1162
  %v1164 = vadd.f32 %v1161, 1.0
  %v1165 = vadd.f32 %v1163, 1.0
  %v1166 = vrcp.pop %v1164
  %v1167 = vmul.f32 1.0, %v1166
  %v1168 = vrcp.pop %v1165
  %v1169 = vmul.f32 1.0, %v1168
  %v1172 = vrot.slane %v1107, 4
  %v1173 = vrot.slane %v1109, 4
  %v1176 = vunpack.c.l.bf16 %v1172
  %v1177 = vunpack.c.l.bf16 %v1173
  %v1178 = vadd.f32 %v1176, %v1148
  %v1179 = vadd.f32 %v1177, %v1152
  %v1180 = vxor.u32 %v1178, 2147483648
  %v1181 = vxor.u32 %v1179, 2147483648
  %v1182 = vmul.f32 %v1180, 1.442695
  %v1183 = vpow.pop %v1182
  %v1184 = vmul.f32 %v1181, 1.442695
  %v1185 = vpow.pop %v1184
  %v1186 = vadd.f32 %v1183, 1.0
  %v1187 = vadd.f32 %v1185, 1.0
  %v1188 = vrcp.pop %v1186
  %v1189 = vmul.f32 1.0, %v1188
  %v1190 = vrcp.pop %v1187
  %v1191 = vmul.f32 1.0, %v1190
  %v1192 = vunpack.c.l.bf16 %v1108
  %v1193 = vunpack.c.l.bf16 %v1110
  %1194 = vmatprep.subr.bf16.mxu0 0
  %1195 = vmatpush1.bf16.msra.mxu0 %v274
  %1196 = vmatprep.subr.bf16.mxu0 0
  %1197 = vmatpush1.bf16.msra.mxu0 %v273
  %1198 = vmatprep.subr.bf16.mxu0 0
  %1199 = vmatpush1.bf16.msra.mxu0 %v272
  %1200 = vmatprep.subr.bf16.mxu0 0
  %1201 = vmatpush1.bf16.msra.mxu0 %v271
  %1202 = vmatprep.subr.bf16.mxu0 0
  %1203 = vmatpush1.bf16.msra.mxu0 %v270
  %1204 = vmatprep.subr.bf16.mxu0 0
  %1205 = vmatpush1.bf16.msra.mxu0 %v269
  %1206 = vmatprep.subr.bf16.mxu0 0
  %1207 = vmatpush1.bf16.msra.mxu0 %v268
  %1208 = vmatprep.subr.bf16.mxu0 0
  %1209 = vmatpush1.bf16.msra.mxu0 %v267
  %1210 = vmatprep.subr.bf16.mxu0 0
  %1211 = vmatpush2.bf16.msra.mxu0 0
  %1212 = vmatprep.subr.bf16.mxu0 0
  %1213 = vmatpush2.bf16.msra.mxu0 0
  %1214 = vmatprep.subr.bf16.mxu0 0
  %1215 = vmatpush2.bf16.msra.mxu0 0
  %1216 = vmatprep.subr.bf16.mxu0 0
  %1217 = vmatpush2.bf16.msra.mxu0 0
  %1218 = vmatprep.subr.bf16.mxu0 0
  %1219 = vmatpush2.bf16.msra.mxu0 0
  %1220 = vmatprep.subr.bf16.mxu0 0
  %1221 = vmatpush2.bf16.msra.mxu0 0
  %1222 = vmatprep.subr.bf16.mxu0 0
  %1223 = vmatpush2.bf16.msra.mxu0 0
  %1224 = vmatprep.subr.bf16.mxu0 0
  %1225 = vmatpush2.bf16.msra.mxu0 0
  %1226 = vmatprep.mubr.bf16.mxu0 0
  %1227 = vmatmul.mubr.bf16.gmra.mxu0 %v1095
  %v1228 = vpop.f32.mrf.mxu0
  %v1229 = vadd.f32 %v63, %v1228
  %v1230 = vpop.f32.mrf.mxu0
  %v1231 = vpop.f32.mrf.mxu0
  %v1232 = vadd.f32 %v63, %v1231
  %v1233 = vpop.f32.mrf.mxu0
  %1234 = vdwg.mxu0
  %v1235 = vmul.f32 %v1167, %v1229
  %v1236 = vmul.f32 %v1169, %v1232
  %v1237 = vadd.f32 %v1192, %v1235
  %v1238 = vadd.f32 %v1193, %v1236
  %v1239 = vtanh.pop %v1237
  %v1240 = vtanh.pop %v1238
  %v1241 = vsub.f32 %v1093, %v1239
  %v1242 = vsub.f32 %v1094, %v1240
  %v1243 = vmul.f32 %v1189, %v1241
  %v1244 = vmul.f32 %v1191, %v1242
  %v1245 = vadd.f32 %v1239, %v1243
  %v1246 = vadd.f32 %v1240, %v1244
  %v1247 = vpack.c.bf16 %v1246, %v1245
  %v1249 = vunpack.c.l.b16 %v1247
  %v1250 = vunpack.c.h.b16 %v1247
  %v1251 = vpack.c.b16 %v1249, %v1249
  %v1252 = vpack.c.b16 %v1250, %v1250
  %s1255 = scalar_lea.vmem %s4, 48
  %1256 = vst [vmem:[%s1255] sm:$0xf] %v1251
  %1257 = vst [vmem:[%s1255 + $0x4] sm:$0xf] %v1252
  %s1258 = scalar_lea.vmem %s0, 168
  %v1259 = vld [vmem:[%s1258] sm:$0xff]
  %v1260 = vld [vmem:[%s1258 + $0x8] sm:$0xf]
  %v1261 = vld [vmem:[%s1258 + $0xc] sm:$0xff]
  %v1262 = vld [vmem:[%s1258 + $0x14] sm:$0xf]
  %1263 = vmatprep.subr.bf16.mxu0 %v135
  %1264 = vmatpush1.bf16.msra.mxu0 %v134
  %1265 = vmatprep.subr.bf16.mxu0 %v133
  %1266 = vmatpush1.bf16.msra.mxu0 %v132
  %1267 = vmatprep.subr.bf16.mxu0 %v131
  %1268 = vmatpush1.bf16.msra.mxu0 %v130
  %1269 = vmatprep.subr.bf16.mxu0 %v129
  %1270 = vmatpush1.bf16.msra.mxu0 %v128
  %1271 = vmatprep.subr.bf16.mxu0 %v127
  %1272 = vmatpush1.bf16.msra.mxu0 %v126
  %1273 = vmatprep.subr.bf16.mxu0 %v125
  %1274 = vmatpush1.bf16.msra.mxu0 %v124
  %1275 = vmatprep.subr.bf16.mxu0 %v123
  %1276 = vmatpush1.bf16.msra.mxu0 %v122
  %1277 = vmatprep.subr.bf16.mxu0 %v121
  %1278 = vmatpush1.bf16.msra.mxu0 %v120
  %1279 = vmatprep.subr.bf16.mxu0 0
  %1280 = vmatpush2.bf16.msra.mxu0 0
  %1281 = vmatprep.subr.bf16.mxu0 0
  %1282 = vmatpush2.bf16.msra.mxu0 0
  %1283 = vmatprep.subr.bf16.mxu0 0
  %1284 = vmatpush2.bf16.msra.mxu0 0
  %1285 = vmatprep.subr.bf16.mxu0 0
  %1286 = vmatpush2.bf16.msra.mxu0 0
  %1287 = vmatprep.subr.bf16.mxu0 0
  %1288 = vmatpush2.bf16.msra.mxu0 0
  %1289 = vmatprep.subr.bf16.mxu0 0
  %1290 = vmatpush2.bf16.msra.mxu0 0
  %1291 = vmatprep.subr.bf16.mxu0 0
  %1292 = vmatpush2.bf16.msra.mxu0 0
  %1293 = vmatprep.subr.bf16.mxu0 0
  %1294 = vmatpush2.bf16.msra.mxu0 0
  %1295 = vmatprep.mubr.bf16.mxu0 0
  %1296 = vmatmul.mubr.bf16.gmra.mxu0 %v1247
  %v1297 = vpop.f32.mrf.mxu0
  %v1298 = vadd.f32 0.0, %v1297
  %v1299 = vpop.f32.mrf.mxu0
  %v1300 = vadd.f32 0.0, %v1299
  %v1301 = vpop.f32.mrf.mxu0
  %v1302 = vadd.f32 0.0, %v1301
  %v1303 = vpop.f32.mrf.mxu0
  %v1304 = vadd.f32 0.0, %v1303
  %1305 = vdwg.mxu0
  %v1306 = vunpack.c.l.bf16 %v1259
  %v1307 = vunpack.c.l.bf16 %v1261
  %v1308 = vadd.f32 %v1306, %v1298
  %v1309 = vadd.f32 %v1307, %v1302
  %v1310 = vxor.u32 %v1308, 2147483648
  %v1311 = vxor.u32 %v1309, 2147483648
  %v1312 = vmul.f32 %v1310, 1.442695
  %v1313 = vpow.pop %v1312
  %v1314 = vmul.f32 %v1311, 1.442695
  %v1315 = vpow.pop %v1314
  %v1316 = vadd.f32 %v1313, 1.0
  %v1317 = vadd.f32 %v1315, 1.0
  %v1318 = vrcp.pop %v1316
  %v1319 = vmul.f32 1.0, %v1318
  %v1320 = vrcp.pop %v1317
  %v1321 = vmul.f32 1.0, %v1320
  %v1324 = vrot.slane %v1259, 4
  %v1325 = vrot.slane %v1261, 4
  %v1328 = vunpack.c.l.bf16 %v1324
  %v1329 = vunpack.c.l.bf16 %v1325
  %v1330 = vadd.f32 %v1328, %v1300
  %v1331 = vadd.f32 %v1329, %v1304
  %v1332 = vxor.u32 %v1330, 2147483648
  %v1333 = vxor.u32 %v1331, 2147483648
  %v1334 = vmul.f32 %v1332, 1.442695
  %v1335 = vpow.pop %v1334
  %v1336 = vmul.f32 %v1333, 1.442695
  %v1337 = vpow.pop %v1336
  %v1338 = vadd.f32 %v1335, 1.0
  %v1339 = vadd.f32 %v1337, 1.0
  %v1340 = vrcp.pop %v1338
  %v1341 = vmul.f32 1.0, %v1340
  %v1342 = vrcp.pop %v1339
  %v1343 = vmul.f32 1.0, %v1342
  %v1344 = vunpack.c.l.bf16 %v1260
  %v1345 = vunpack.c.l.bf16 %v1262
  %1346 = vmatprep.subr.bf16.mxu0 0
  %1347 = vmatpush1.bf16.msra.mxu0 %v274
  %1348 = vmatprep.subr.bf16.mxu0 0
  %1349 = vmatpush1.bf16.msra.mxu0 %v273
  %1350 = vmatprep.subr.bf16.mxu0 0
  %1351 = vmatpush1.bf16.msra.mxu0 %v272
  %1352 = vmatprep.subr.bf16.mxu0 0
  %1353 = vmatpush1.bf16.msra.mxu0 %v271
  %1354 = vmatprep.subr.bf16.mxu0 0
  %1355 = vmatpush1.bf16.msra.mxu0 %v270
  %1356 = vmatprep.subr.bf16.mxu0 0
  %1357 = vmatpush1.bf16.msra.mxu0 %v269
  %1358 = vmatprep.subr.bf16.mxu0 0
  %1359 = vmatpush1.bf16.msra.mxu0 %v268
  %1360 = vmatprep.subr.bf16.mxu0 0
  %1361 = vmatpush1.bf16.msra.mxu0 %v267
  %1362 = vmatprep.subr.bf16.mxu0 0
  %1363 = vmatpush2.bf16.msra.mxu0 0
  %1364 = vmatprep.subr.bf16.mxu0 0
  %1365 = vmatpush2.bf16.msra.mxu0 0
  %1366 = vmatprep.subr.bf16.mxu0 0
  %1367 = vmatpush2.bf16.msra.mxu0 0
  %1368 = vmatprep.subr.bf16.mxu0 0
  %1369 = vmatpush2.bf16.msra.mxu0 0
  %1370 = vmatprep.subr.bf16.mxu0 0
  %1371 = vmatpush2.bf16.msra.mxu0 0
  %1372 = vmatprep.subr.bf16.mxu0 0
  %1373 = vmatpush2.bf16.msra.mxu0 0
  %1374 = vmatprep.subr.bf16.mxu0 0
  %1375 = vmatpush2.bf16.msra.mxu0 0
  %1376 = vmatprep.subr.bf16.mxu0 0
  %1377 = vmatpush2.bf16.msra.mxu0 0
  %1378 = vmatprep.mubr.bf16.mxu0 0
  %1379 = vmatmul.mubr.bf16.gmra.mxu0 %v1247
  %v1380 = vpop.f32.mrf.mxu0
  %v1381 = vadd.f32 %v63, %v1380
  %v1382 = vpop.f32.mrf.mxu0
  %v1383 = vpop.f32.mrf.mxu0
  %v1384 = vadd.f32 %v63, %v1383
  %v1385 = vpop.f32.mrf.mxu0
  %1386 = vdwg.mxu0
  %v1387 = vmul.f32 %v1319, %v1381
  %v1388 = vmul.f32 %v1321, %v1384
  %v1389 = vadd.f32 %v1344, %v1387
  %v1390 = vadd.f32 %v1345, %v1388
  %v1391 = vtanh.pop %v1389
  %v1392 = vtanh.pop %v1390
  %v1393 = vsub.f32 %v1245, %v1391
  %v1394 = vsub.f32 %v1246, %v1392
  %v1395 = vmul.f32 %v1341, %v1393
  %v1396 = vmul.f32 %v1343, %v1394
  %v1397 = vadd.f32 %v1391, %v1395
  %v1398 = vadd.f32 %v1392, %v1396
  %v1399 = vpack.c.bf16 %v1398, %v1397
  %v1401 = vunpack.c.l.b16 %v1399
  %v1402 = vunpack.c.h.b16 %v1399
  %v1403 = vpack.c.b16 %v1401, %v1401
  %v1404 = vpack.c.b16 %v1402, %v1402
  %s1407 = scalar_lea.vmem %s4, 56
  %1408 = vst [vmem:[%s1407] sm:$0xf] %v1403
  %1409 = vst [vmem:[%s1407 + $0x4] sm:$0xf] %v1404
  %1410 = vst [vmem:[#allocation2] sm:$0xff] %v1397
  %1411 = vst [vmem:[#allocation2 + $0x8] sm:$0xff] %v1398
  // Predicated region
  $region22: #{encoder_forward.2} parent=0 // pred_check
    %p1412 = pneg %p20
  $region23: #{encoder_forward.2} parent=0 // pred_check_branch
    %1414 = sbr.rel (%p1412) target = $region25
  $region24: #{encoder_forward.2} parent=0 // pred_region
    %1415 = vst [vmem:[%s5] sm:$0xff] %v1397
    %1416 = vst [vmem:[%s5 + $0x8] sm:$0xff] %v1398
  $region25: #{encoder_forward.2} parent=0 // pred_fallthru
    _
  // Predicated region
  $region26: #{encoder_forward.2} parent=0 // pred_check
    _
  $region27: #{encoder_forward.2} parent=0 // pred_check_branch
    %1418 = sbr.rel (0) target = $region29
  $region28: #{encoder_forward.2} parent=0 // pred_region
    _
  $region29: #{encoder_forward.2} parent=0 // pred_fallthru
    _
  // Predicated region
  $region30: #{encoder_forward.2} parent=0 // pred_check
    _
  $region31: #{encoder_forward.2} parent=0 // pred_check_branch
    %1420 = sbr.rel (0) target = $region33
  $region32: #{encoder_forward.2} parent=0 // pred_region
    _
  $region33: #{encoder_forward.2} parent=0 // pred_fallthru
    _
  // Predicated region
  $region34: #{encoder_forward.2} parent=0 // pred_check
    _
  $region35: #{encoder_forward.2} parent=0 // pred_check_branch
    %1422 = sbr.rel (0) target = $region37
  $region36: #{encoder_forward.2} parent=0 // pred_region
    _
  $region37: #{encoder_forward.2} parent=0 // pred_fallthru
    _
  // Predicated region
  $region38: #{encoder_forward.2} parent=0 // pred_check
    _
  $region39: #{encoder_forward.2} parent=0 // pred_check_branch
    %1424 = sbr.rel (0) target = $region41
  $region40: #{encoder_forward.2} parent=0 // pred_region
    _
  $region41: #{encoder_forward.2} parent=0 // pred_fallthru
    _

</llo_original>
